<compile_context>
chip_gen: v6e
topology: v6e:2x2x1
jax: 0.10.0
libtpu: 0.0.40
codegen_flags: <defaults>
</compile_context>

<pallas_src>
import jax
import jax.numpy as jnp
from jax.experimental import pallas as pl
from jax.experimental.pallas import tpu as pltpu

EPS = 1e-5


def _round_up(v, m):
    return (v + m - 1) // m * m


def _pad_to(a, shape):
    pads = [(0, t - s) for s, t in zip(a.shape, shape)]
    return jnp.pad(a, pads)


# --------------------------------------------------------------------------
# Kernel
# --------------------------------------------------------------------------
def valnet_kernel(x_ref, w1_ref, consts_ref, w2_ref, b2_ref, out_ref, h_acc):
    # consts_ref rows: 0 = b1, 1 = gamma, 2 = beta      (all (1, Hp) slices)
    k = pl.program_id(0)

    @pl.when(k == 0)
    def _():
        # Initialize the accumulator with the fc1 bias (folds the +b1 add).
        h_acc[...] = jnp.broadcast_to(consts_ref[0:1, :], h_acc.shape)

    # fc1 partial matmul over the current N-tile (bf16 MXU, f32 accumulate).
    h_acc[...] += jnp.dot(x_ref[...], w1_ref[...],
                          preferred_element_type=jnp.float32)

    @pl.when(k == pl.num_programs(0) - 1)
    def _():
        h = h_acc[...]                                       # (B, Hp) f32

        # BatchNorm1d, training-mode forward (batch statistics, biased var).
        mean = jnp.mean(h, axis=0, keepdims=True)            # (1, Hp)
        d = h - mean
        var = jnp.mean(d * d, axis=0, keepdims=True)
        h_n = d * jax.lax.rsqrt(var + EPS)
        h_n = consts_ref[1:2, :] * h_n + consts_ref[2:3, :]  # gamma, beta
        h_n = jnp.maximum(h_n, 0.0)                          # ReLU

        # fc2 (output width 1): VPU multiply + lane reduce instead of a
        # 1-lane-wide MXU matmul.  Padded H columns are exactly zero here.
        y = jnp.sum(h_n * w2_ref[...], axis=-1, keepdims=True)   # (B, 1)
        y = y + b2_ref[0, 0]
        out_ref[...] = jnp.maximum(y, 0.0).astype(out_ref.dtype)


# --------------------------------------------------------------------------
# One-time parameter preparation (hoisted out of the per-call path)
# --------------------------------------------------------------------------
def prepare_params(params, *, tk=4096):
    """Pad + bf16-cast the weights ONCE (call at parameter-setup time, reuse
    across forward calls).  tk is the fc1 reduction tile; 4096 is a safe
    sweet spot for v5e/v6e/v7x (3 MB bf16 w1 tile, <=9.4 MB triple-buffered).
    """
    w1, b1, gamma, beta, w2, b2 = (params["w1"], params["b1"], params["gamma"],
                                   params["beta"], params["w2"], params["b2"])
    N, H = w1.shape
    Hp = _round_up(H, 128)                 # 360 -> 384 (lane-dense epilogue)

    # Reduction tiling: pad N to a multiple of 128, then pick a tile size that
    # divides the padded extent with minimal extra padding.
    Np128 = _round_up(N, 128)
    grid_k = pl.cdiv(Np128, max(128, _round_up(tk, 128)))
    tk = _round_up(pl.cdiv(Np128, grid_k), 128)
    Np = tk * grid_k

    return {
        # --- arrays (already padded / cast; streamed straight by the kernel)
        "w1": _pad_to(w1, (Np, Hp)).astype(jnp.bfloat16),
        "consts": _pad_to(jnp.concatenate([b1, gamma, beta], axis=0),
                          (3, Hp)).astype(jnp.float32),
        "w2_row": _pad_to(w2.reshape(1, H), (1, Hp)).astype(jnp.float32),
        "b2": b2.reshape(1, 1).astype(jnp.float32),
        # --- static tiling metadata
        "n": N, "np": Np, "hp": Hp, "tk": tk, "grid_k": grid_k,
    }


def _w1_block_spec(tk, Hp, grid_k):
    idx = lambda k: (k, 0)
    if grid_k >= 3:
        # Pure DMA stream with near-zero compute per step: a third buffer
        # hides per-step DMA-issue/semaphore bubbles.  Fall back cleanly if
        # this JAX version's BlockSpec has no pipeline_mode kwarg.
        try:
            return pl.BlockSpec((tk, Hp), idx, pipeline_mode=pl.Buffered(3))
        except TypeError:
            pass
    return pl.BlockSpec((tk, Hp), idx)


# --------------------------------------------------------------------------
# Forward call (only pads/casts x per call; weights are pre-prepared)
# --------------------------------------------------------------------------
def valnet_forward(x, prep):
    """x: (B, N) float32.  prep: output of prepare_params()."""
    B, N = x.shape
    assert N == prep["n"], f"x feature dim {N} != prepared params dim {prep['n']}"
    Np, Hp, tk, grid_k = prep["np"], prep["hp"], prep["tk"], prep["grid_k"]

    x_p = _pad_to(x, (B, Np)).astype(jnp.bfloat16)

    cost = pl.CostEstimate(
        flops=2 * B * Np * Hp + 12 * B * Hp,
        transcendentals=Hp,
        bytes_accessed=2 * Np * Hp + 2 * B * Np + 4 * 4 * Hp + 4 * B,
    )

    return pl.pallas_call(
        valnet_kernel,
        out_shape=jax.ShapeDtypeStruct((B, 1), jnp.float32),
        grid_spec=pltpu.PrefetchScalarGridSpec(
            num_scalar_prefetch=0,
            grid=(grid_k,),
            in_specs=[
                pl.BlockSpec((B, tk), lambda k: (0, k)),    # x tile (bf16)
                _w1_block_spec(tk, Hp, grid_k),             # w1 tile (bf16)
                pl.BlockSpec((3, Hp), lambda k: (0, 0)),    # [b1; gamma; beta]
                pl.BlockSpec((1, Hp), lambda k: (0, 0)),    # w2 as a row
                pl.BlockSpec(memory_space=pltpu.MemorySpace.SMEM),  # b2 scalar
            ],
            out_specs=pl.BlockSpec((B, 1), lambda k: (0, 0)),
            scratch_shapes=[pltpu.VMEM((B, Hp), jnp.float32)],
        ),
        compiler_params=pltpu.CompilerParams(
            dimension_semantics=("arbitrary",),
            vmem_limit_bytes=32 * 1024 * 1024,
        ),
        cost_estimate=cost,
    )(x_p, prep["w1"], prep["consts"], prep["w2_row"], prep["b2"])


# --------------------------------------------------------------------------
# Init + pure-JAX reference
# --------------------------------------------------------------------------
def init_params(key, n, hidden=360):
    """Deterministic init, PyTorch-Linear-style uniform(-1/sqrt(fan_in), ...)."""
    k1, k2, k3, k4 = jax.random.split(key, 4)
    bound1 = 1.0 / jnp.sqrt(n)
    bound2 = 1.0 / jnp.sqrt(hidden)
    return {
        "w1": jax.random.uniform(k1, (n, hidden), jnp.float32, -bound1, bound1),
        "b1": jax.random.uniform(k2, (1, hidden), jnp.float32, -bound1, bound1),
        "gamma": jnp.ones((1, hidden), jnp.float32),   # BN weight init = 1
        "beta": jnp.zeros((1, hidden), jnp.float32),   # BN bias init = 0
        "w2": jax.random.uniform(k3, (hidden, 1), jnp.float32, -bound2, bound2),
        "b2": jax.random.uniform(k4, (1, 1), jnp.float32, -bound2, bound2),
    }


def valnet_reference(x, p, *, quantize_bf16=False):
    """Pure-JAX reference of the PyTorch forward.  quantize_bf16=True mirrors
    the kernel's bf16 storage of x/w1 (f32 accumulation)."""
    xx, w1 = x, p["w1"]
    if quantize_bf16:
        xx = xx.astype(jnp.bfloat16).astype(jnp.float32)
        w1 = w1.astype(jnp.bfloat16).astype(jnp.float32)
    h = xx @ w1 + p["b1"]
    mean = jnp.mean(h, axis=0, keepdims=True)
    var = jnp.mean((h - mean) ** 2, axis=0, keepdims=True)
    h = p["gamma"] * (h - mean) * jax.lax.rsqrt(var + EPS) + p["beta"]
    h = jnp.maximum(h, 0.0)
    return jnp.maximum(h @ p["w2"] + p["b2"], 0.0)


if __name__ == "__main__":
    # Small shapes consistent with the module: batch=8, n=1000 features
    # (deliberately NOT a multiple of 128 to exercise the padding path),
    # hidden=360, output=1.  The real module uses n=11206; prepare_params
    # pads any n internally.
    B, N, H = 8, 1000, 360
    key = jax.random.PRNGKey(0)
    kx, kp = jax.random.split(key)
    x = jax.random.normal(kx, (B, N), jnp.float32)
    params = init_params(kp, N, H)

    # One-time weight preparation (padding + bf16 cast hoisted out of the
    # per-call path).  Default large tile => single grid step at this size.
    prep = prepare_params(params)
    out = jax.block_until_ready(valnet_forward(x, prep))

    # Small tile to exercise the multi-step accumulation + Buffered(3) path.
    prep_multi = prepare_params(params, tk=256)
    out_multi = jax.block_until_ready(valnet_forward(x, prep_multi))

    ref_q = valnet_reference(x, params, quantize_bf16=True)
    ref_f32 = valnet_reference(x, params)

    assert out.shape == (B, 1)
    # Tight check against the bf16-input reference (same quantization).
    assert jnp.allclose(out, ref_q, atol=2e-3, rtol=2e-3), (out, ref_q)
    assert jnp.allclose(out_multi, ref_q, atol=2e-3, rtol=2e-3), (out_multi, ref_q)
    # Loose check against the exact f32 PyTorch-semantics reference
    # (bf16 weight storage is the only approximation).
    assert jnp.allclose(out, ref_f32, atol=5e-2, rtol=5e-2), (out, ref_f32)
    print("KERNEL_OK")
</pallas_src>

<mosaic_0001>
module attributes {stable_mosaic.version = 11 : i64} {
  func.func @valnet_kernel(%arg0: i32, %arg1: memref<8x1024xbf16, #tpu.memory_space<vmem>>, %arg2: memref<1024x384xbf16, #tpu.memory_space<vmem>>, %arg3: memref<3x384xf32, #tpu.memory_space<vmem>>, %arg4: memref<1x384xf32, #tpu.memory_space<vmem>>, %arg5: memref<1x1xf32, #tpu.memory_space<smem>>, %arg6: memref<8x1xf32, #tpu.memory_space<vmem>>, %arg7: memref<8x384xf32, #tpu.memory_space<vmem>>) attributes {dimension_semantics = [#tpu.dimension_semantics<arbitrary>], iteration_bounds = array<i64: 1>, scalar_prefetch = 0 : i64, scratch_operands = 1 : i64, tpu.core_type = #tpu.core_type<tc>, window_params = [{transform_indices = @transform_0, window_bounds = array<i64: 8, 1024>}, {transform_indices = @transform_1, window_bounds = array<i64: 1024, 384>}, {pipeline_mode = #tpu.pipeline_mode<synchronous>, transform_indices = @transform_2, window_bounds = array<i64: 3, 384>}, {pipeline_mode = #tpu.pipeline_mode<synchronous>, transform_indices = @transform_3, window_bounds = array<i64: 1, 384>}, {transform_indices = @transform_4, window_bounds = array<i64: 1, 1>}, {pipeline_mode = #tpu.pipeline_mode<synchronous>, transform_indices = @transform_5, window_bounds = array<i64: 8, 1>}]} {
    %c0_i32 = arith.constant 0 : i32
    %0 = arith.cmpi eq, %arg0, %c0_i32 : i32
    %1 = arith.extui %0 : i1 to i32
    %c0_i32_0 = arith.constant 0 : i32
    %2 = arith.cmpi ne, %1, %c0_i32_0 : i32
    scf.if %2 {
      %c0_10 = arith.constant 0 : index
      %c0_11 = arith.constant 0 : index
      %12 = vector.load %arg3[%c0_10, %c0_11] : memref<3x384xf32, #tpu.memory_space<vmem>>, vector<1x384xf32>
      %13 = vector.shape_cast %12 : vector<1x384xf32> to vector<1x384xf32>
      %14 = vector.broadcast %13 : vector<1x384xf32> to vector<8x384xf32>
      %c0_12 = arith.constant 0 : index
      %c0_13 = arith.constant 0 : index
      %15 = vector.load %arg7[%c0_12, %c0_13] : memref<8x384xf32, #tpu.memory_space<vmem>>, vector<8x384xf32>
      tpu.vector_store %arg7[%c0_12, %c0_13], %14 {strides = array<i32>} : memref<8x384xf32, #tpu.memory_space<vmem>>, vector<8x384xf32>,
    } else {
    }
    %c0 = arith.constant 0 : index
    %c0_1 = arith.constant 0 : index
    %3 = vector.load %arg7[%c0, %c0_1] : memref<8x384xf32, #tpu.memory_space<vmem>>, vector<8x384xf32>
    %c0_2 = arith.constant 0 : index
    %c0_3 = arith.constant 0 : index
    %4 = vector.load %arg1[%c0_2, %c0_3] : memref<8x1024xbf16, #tpu.memory_space<vmem>>, vector<8x1024xbf16>
    %c0_4 = arith.constant 0 : index
    %c0_5 = arith.constant 0 : index
    %5 = vector.load %arg2[%c0_4, %c0_5] : memref<1024x384xbf16, #tpu.memory_space<vmem>>, vector<1024x384xbf16>
    %cst = arith.constant dense<0.000000e+00> : vector<8x384xf32>
    %6 = tpu.matmul %4, %5, %cst {dimension_numbers = #tpu.dot_dimension_numbers<[1], [0], [0], [1], [0, 0, 1, 1], [], []>} : vector<8x1024xbf16>, vector<1024x384xbf16>, vector<8x384xf32> -> vector<8x384xf32>
    %7 = arith.addf %3, %6 : vector<8x384xf32>
    %c0_6 = arith.constant 0 : index
    %c0_7 = arith.constant 0 : index
    %8 = vector.load %arg7[%c0_6, %c0_7] : memref<8x384xf32, #tpu.memory_space<vmem>>, vector<8x384xf32>
    tpu.vector_store %arg7[%c0_6, %c0_7], %7 {strides = array<i32>} : memref<8x384xf32, #tpu.memory_space<vmem>>, vector<8x384xf32>,
    %c0_i32_8 = arith.constant 0 : i32
    %9 = arith.cmpi eq, %arg0, %c0_i32_8 : i32
    %10 = arith.extui %9 : i1 to i32
    %c0_i32_9 = arith.constant 0 : i32
    %11 = arith.cmpi ne, %10, %c0_i32_9 : i32
    scf.if %11 {
      %c0_10 = arith.constant 0 : index
      %c0_11 = arith.constant 0 : index
      %12 = vector.load %arg7[%c0_10, %c0_11] : memref<8x384xf32, #tpu.memory_space<vmem>>, vector<8x384xf32>
      %cst_12 = arith.constant dense<0.000000e+00> : vector<384xf32>
      %13 = vector.multi_reduction <add>, %12, %cst_12 [0] : vector<8x384xf32> to vector<384xf32>
      %14 = vector.shape_cast %13 : vector<384xf32> to vector<1x384xf32>
      %cst_13 = arith.constant 8.000000e+00 : f32
      %15 = vector.broadcast %cst_13 : f32 to vector<1x384xf32>
      %16 = arith.divf %14, %15 : vector<1x384xf32>
      %17 = vector.broadcast %16 : vector<1x384xf32> to vector<8x384xf32>
      %18 = arith.subf %12, %17 : vector<8x384xf32>
      %19 = arith.mulf %18, %18 : vector<8x384xf32>
      %cst_14 = arith.constant dense<0.000000e+00> : vector<384xf32>
      %20 = vector.multi_reduction <add>, %19, %cst_14 [0] : vector<8x384xf32> to vector<384xf32>
      %21 = vector.shape_cast %20 : vector<384xf32> to vector<1x384xf32>
      %cst_15 = arith.constant 8.000000e+00 : f32
      %22 = vector.broadcast %cst_15 : f32 to vector<1x384xf32>
      %23 = arith.divf %21, %22 : vector<1x384xf32>
      %cst_16 = arith.constant 9.99999974E-6 : f32
      %24 = vector.broadcast %cst_16 : f32 to vector<1x384xf32>
      %25 = arith.addf %23, %24 : vector<1x384xf32>
      %26 = math.rsqrt %25 : vector<1x384xf32>
      %27 = vector.broadcast %26 : vector<1x384xf32> to vector<8x384xf32>
      %28 = arith.mulf %18, %27 : vector<8x384xf32>
      %c1 = arith.constant 1 : index
      %c0_17 = arith.constant 0 : index
      %29 = vector.load %arg3[%c1, %c0_17] : memref<3x384xf32, #tpu.memory_space<vmem>>, vector<1x384xf32>
      %30 = vector.broadcast %29 : vector<1x384xf32> to vector<8x384xf32>
      %31 = arith.mulf %30, %28 : vector<8x384xf32>
      %c2 = arith.constant 2 : index
      %c0_18 = arith.constant 0 : index
      %32 = vector.load %arg3[%c2, %c0_18] : memref<3x384xf32, #tpu.memory_space<vmem>>, vector<1x384xf32>
      %33 = vector.broadcast %32 : vector<1x384xf32> to vector<8x384xf32>
      %34 = arith.addf %31, %33 : vector<8x384xf32>
      %cst_19 = arith.constant 0.000000e+00 : f32
      %35 = vector.broadcast %cst_19 : f32 to vector<8x384xf32>
      %36 = arith.maximumf %34, %35 : vector<8x384xf32>
      %c0_20 = arith.constant 0 : index
      %c0_21 = arith.constant 0 : index
      %37 = vector.load %arg4[%c0_20, %c0_21] : memref<1x384xf32, #tpu.memory_space<vmem>>, vector<1x384xf32>
      %38 = vector.broadcast %37 : vector<1x384xf32> to vector<8x384xf32>
      %39 = arith.mulf %36, %38 : vector<8x384xf32>
      %cst_22 = arith.constant dense<0.000000e+00> : vector<8xf32>
      %40 = vector.multi_reduction <add>, %39, %cst_22 [1] : vector<8x384xf32> to vector<8xf32>
      %41 = vector.shape_cast %40 : vector<8xf32> to vector<8x1xf32>
      %c0_23 = arith.constant 0 : index
      %c0_24 = arith.constant 0 : index
      %42 = memref.load %arg5[%c0_23, %c0_24] : memref<1x1xf32, #tpu.memory_space<smem>>
      %43 = vector.broadcast %42 : f32 to vector<8x1xf32>
      %44 = arith.addf %41, %43 : vector<8x1xf32>
      %cst_25 = arith.constant 0.000000e+00 : f32
      %45 = vector.broadcast %cst_25 : f32 to vector<8x1xf32>
      %46 = arith.maximumf %44, %45 : vector<8x1xf32>
      %c0_26 = arith.constant 0 : index
      %c0_27 = arith.constant 0 : index
      %47 = vector.load %arg6[%c0_26, %c0_27] : memref<8x1xf32, #tpu.memory_space<vmem>>, vector<8x1xf32>
      tpu.vector_store %arg6[%c0_26, %c0_27], %46 {strides = array<i32>} : memref<8x1xf32, #tpu.memory_space<vmem>>, vector<8x1xf32>,
    } else {
    }
    return
  }
  func.func @transform_0(%arg0: i32) -> (i32, i32) {
    %c0_i32 = arith.constant 0 : i32
    %c0_i32_0 = arith.constant 0 : i32
    return %c0_i32, %arg0 : i32, i32
  }
  func.func @transform_1(%arg0: i32) -> (i32, i32) {
    %c0_i32 = arith.constant 0 : i32
    %c0_i32_0 = arith.constant 0 : i32
    return %arg0, %c0_i32 : i32, i32
  }
  func.func @transform_2(%arg0: i32) -> (i32, i32) {
    %c0_i32 = arith.constant 0 : i32
    %c0_i32_0 = arith.constant 0 : i32
    %c0_i32_1 = arith.constant 0 : i32
    return %c0_i32, %c0_i32_0 : i32, i32
  }
  func.func @transform_3(%arg0: i32) -> (i32, i32) {
    %c0_i32 = arith.constant 0 : i32
    %c0_i32_0 = arith.constant 0 : i32
    %c0_i32_1 = arith.constant 0 : i32
    return %c0_i32, %c0_i32_0 : i32, i32
  }
  func.func @transform_4(%arg0: i32) -> (i32, i32) {
    %c0_i32 = arith.constant 0 : i32
    %c0_i32_0 = arith.constant 0 : i32
    %c0_i32_1 = arith.constant 0 : i32
    return %c0_i32, %c0_i32_0 : i32, i32
  }
  func.func @transform_5(%arg0: i32) -> (i32, i32) {
    %c0_i32 = arith.constant 0 : i32
    %c0_i32_0 = arith.constant 0 : i32
    %c0_i32_1 = arith.constant 0 : i32
    return %c0_i32, %c0_i32_0 : i32, i32
  }
}

</mosaic_0001>

<llo_original>
// kernel: tpu_custom_call.1
$region0: #{tpu_custom_call.1}
  #allocation0 [shape = 'u32[]', space=smem, size = 0x4, offset = 0x4, fixed_abs, tag = 'smem constant byte address 0x4 - core index']
  #allocation1 [shape = 'u32[144,128]{1,0:T(1,128)}', space=vmem, size = 0x12000, scoped, tag = 'internal scratch']
  #allocation2 [shape = 'f32[8,384]{1,0:T(8,128)}', space=vmem, size = 0x3000, scoped, tag = 'scratch operand']
  #allocation3 [shape = 'f32[1,1]{1,0:T(1,128)S(6)}', space=smem, size = 0x200, scoped, tag = 'scoped memory for tpu_custom_call.1']
  %s0 = inlined_call_operand.hbm [shape: bf16[8,1024], index: 0, kind: input, shape index: {}]
  %s1 = inlined_call_operand.hbm [shape: bf16[1024,384], index: 1, kind: input, shape index: {}]
  %s2 = inlined_call_operand.hbm [shape: f32[3,384], index: 2, kind: input, shape index: {}]
  %s3 = inlined_call_operand.vmem [shape: f32[1,384], index: 3, kind: input, shape index: {}]
  %s4 = inlined_call_operand.<no memory space> [shape: f32[1,1], index: 4, kind: input, shape index: {}]
  %s5 = inlined_call_operand.vmem [shape: f32[8,1], index: 5, kind: output, shape index: {}]
  %s6 = sld [smem:[#allocation0]]
  $region50: #{tpu_custom_call.1} parent=0
    _
  %s8 = ssub.s32 1, %s6
  %s9 = scalar_select 0, %s8, %s6
  %10 = sst [smem:[#allocation3]] %s4
  $region1: #{tpu_custom_call.1} parent=0
    #allocation4 [shape = 'u8[16384]{0}', space=vmem, size = 0x4000, scoped, tag = 'input window, operand 0, single buffered']
    #allocation5 [shape = 's32[1]{0}', space=sflag, size = 0x4, scoped, tag = 'scoped memory for tpu_custom_call.1']
    #allocation6 [shape = 'u8[786432]{0}', space=vmem, size = 0xc0000, scoped, tag = 'input window, operand 1, single buffered']
    #allocation7 [shape = 's32[1]{0}', space=sflag, size = 0x4, scoped, tag = 'scoped memory for tpu_custom_call.1']
    #allocation8 [shape = 'u8[6144]{0}', space=vmem, size = 0x1800, scoped, tag = 'input window, operand 2, single buffered']
    %11 = vsyncpa [#allocation5], 0
    %12 = vsyncpa [#allocation7], 0
    // Predicated region
    $region2: #{tpu_custom_call.1} parent=1 // pred_check
      _
    $region3: #{tpu_custom_call.1} parent=1 // pred_check_branch
      %14 = sbr.rel (0) target = $region5
    $region4: #{tpu_custom_call.1} parent=1 // pred_region
      %s16 = ssub.s32 512, 512
      %17 = vsyncadd [#allocation5], %s16
      %s19 = sshll.u32 [#allocation4], 4
      %s20 = int_to_ptr.vmem [resolvable:$true] %s19
      %22 = dma.hbm_to_vmem [thread:$0]  %s0, 512, %s20, [#allocation5]
    $region5: #{tpu_custom_call.1} parent=1 // pred_fallthru
      _
    // Predicated region
    $region6: #{tpu_custom_call.1} parent=1 // pred_check
      _
    $region7: #{tpu_custom_call.1} parent=1 // pred_check_branch
      %24 = sbr.rel (0) target = $region9
    $region8: #{tpu_custom_call.1} parent=1 // pred_region
      %s26 = ssub.s32 24576, 24576
      %27 = vsyncadd [#allocation7], %s26
      %s28 = sshll.u32 [#allocation6], 4
      %s29 = int_to_ptr.vmem [resolvable:$true] %s28
      %34 = dma.hbm_to_vmem [thread:$0]  %s1, 24576, %s29, [#allocation7], 192, 192, 12
    $region9: #{tpu_custom_call.1} parent=1 // pred_fallthru
      _
    // Predicated region
    $region10: #{tpu_custom_call.1} parent=1 // pred_check
      _
    $region11: #{tpu_custom_call.1} parent=1 // pred_check_branch
      %36 = sbr.rel (0) target = $region13
    $region12: #{tpu_custom_call.1} parent=1 // pred_region
      %s38 = ssub.s32 192, 192
      %39 = vsyncadd [#allocation7], %s38
      %s41 = sshll.u32 [#allocation8], 4
      %s42 = int_to_ptr.vmem [resolvable:$true] %s41
      %44 = dma.hbm_to_vmem [thread:$0]  %s2, 192, %s42, [#allocation7]
    $region13: #{tpu_custom_call.1} parent=1 // pred_fallthru
      _
    // Predicated region
    $region14: #{tpu_custom_call.1} parent=1 // pred_check
      _
    $region15: #{tpu_custom_call.1} parent=1 // pred_check_branch
      %46 = sbr.rel (0) target = $region17
    $region16: #{tpu_custom_call.1} parent=1 // pred_region
      _
    $region17: #{tpu_custom_call.1} parent=1 // pred_fallthru
      _
    // Predicated region
    $region18: #{tpu_custom_call.1} parent=1 // pred_check
      _
    $region19: #{tpu_custom_call.1} parent=1 // pred_check_branch
      %48 = sbr.rel (0) target = $region21
    $region20: #{tpu_custom_call.1} parent=1 // pred_region
      _
    $region21: #{tpu_custom_call.1} parent=1 // pred_fallthru
      _
    // Predicated region
    $region22: #{tpu_custom_call.1} parent=1 // pred_check
      _
    $region23: #{tpu_custom_call.1} parent=1 // pred_check_branch
      %50 = sbr.rel (0) target = $region25
    $region24: #{tpu_custom_call.1} parent=1 // pred_region
      %51 = dma.done [#allocation5], 512
    $region25: #{tpu_custom_call.1} parent=1 // pred_fallthru
      _
    // Predicated region
    $region26: #{tpu_custom_call.1} parent=1 // pred_check
      _
    $region27: #{tpu_custom_call.1} parent=1 // pred_check_branch
      %53 = sbr.rel (0) target = $region29
    $region28: #{tpu_custom_call.1} parent=1 // pred_region
      %54 = dma.done [#allocation7], 24576
    $region29: #{tpu_custom_call.1} parent=1 // pred_fallthru
      _
    // Predicated region
    $region30: #{tpu_custom_call.1} parent=1 // pred_check
      _
    $region31: #{tpu_custom_call.1} parent=1 // pred_check_branch
      %56 = sbr.rel (0) target = $region33
    $region32: #{tpu_custom_call.1} parent=1 // pred_region
      %57 = dma.done [#allocation7], 192
    $region33: #{tpu_custom_call.1} parent=1 // pred_fallthru
      _
    %p59 = scmp.eq.s32.totalorder 0, 0
    // Predicated region
    $region34: #{tpu_custom_call.1} parent=1 // pred_check
      %p60 = pneg %p59
    $region35: #{tpu_custom_call.1} parent=1 // pred_check_branch
      %62 = sbr.rel (%p60) target = $region37
    $region36: #{tpu_custom_call.1} parent=1 // pred_region
      %v63 = vld [vmem:[#allocation8] ss:$4 sm:$0x7]
      %v65 = vlaneseq
      %v66 = vshrl.u32 %v65, 7
      %v67 = vsub.s32 0, %v66
      %v68 = vrot.slane %v63, %v67
      %v69 = vlaneseq
      %v70 = vshrl.u32 %v69, 7
      %v71 = vsub.s32 1, %v70
      %v72 = vrot.slane %v63, %v71
      %v73 = vlaneseq
      %v74 = vshrl.u32 %v73, 7
      %v75 = vsub.s32 2, %v74
      %v76 = vrot.slane %v63, %v75
      %80 = vst [vmem:[#allocation2] sm:$0xff] %v68
      %81 = vst [vmem:[#allocation2 + $0x8] sm:$0xff] %v72
      %82 = vst [vmem:[#allocation2 + $0x10] sm:$0xff] %v76
    $region37: #{tpu_custom_call.1} parent=1 // pred_fallthru
      _
    %v83 = vld [vmem:[#allocation2] sm:$0xff]
    %v84 = vld [vmem:[#allocation2 + $0x8] sm:$0xff]
    %v85 = vld [vmem:[#allocation2 + $0x10] sm:$0xff]
    %v86 = vld [vmem:[#allocation4] sm:$0xff]
    %v87 = vld [vmem:[#allocation4 + $0x8] sm:$0xff]
    %v88 = vld [vmem:[#allocation4 + $0x10] sm:$0xff]
    %v89 = vld [vmem:[#allocation4 + $0x18] sm:$0xff]
    %v90 = vld [vmem:[#allocation6] sm:$0xff]
    %v91 = vld [vmem:[#allocation6 + $0x8] sm:$0xf]
    %v92 = vld [vmem:[#allocation6 + $0xc] sm:$0xff]
    %v93 = vld [vmem:[#allocation6 + $0x14] sm:$0xf]
    %v94 = vld [vmem:[#allocation6 + $0x18] sm:$0xff]
    %v95 = vld [vmem:[#allocation6 + $0x20] sm:$0xf]
    %v96 = vld [vmem:[#allocation6 + $0x24] sm:$0xff]
    %v97 = vld [vmem:[#allocation6 + $0x2c] sm:$0xf]
    %v98 = vld [vmem:[#allocation6 + $0x30] sm:$0xff]
    %v99 = vld [vmem:[#allocation6 + $0x38] sm:$0xf]
    %v100 = vld [vmem:[#allocation6 + $0x3c] sm:$0xff]
    %v101 = vld [vmem:[#allocation6 + $0x44] sm:$0xf]
    %v102 = vld [vmem:[#allocation6 + $0x48] sm:$0xff]
    %v103 = vld [vmem:[#allocation6 + $0x50] sm:$0xf]
    %v104 = vld [vmem:[#allocation6 + $0x54] sm:$0xff]
    %v105 = vld [vmem:[#allocation6 + $0x5c] sm:$0xf]
    %v106 = vld [vmem:[#allocation6 + $0x60] sm:$0xff]
    %v107 = vld [vmem:[#allocation6 + $0x68] sm:$0xf]
    %v108 = vld [vmem:[#allocation6 + $0x6c] sm:$0xff]
    %v109 = vld [vmem:[#allocation6 + $0x74] sm:$0xf]
    %v110 = vld [vmem:[#allocation6 + $0x78] sm:$0xff]
    %v111 = vld [vmem:[#allocation6 + $0x80] sm:$0xf]
    %v112 = vld [vmem:[#allocation6 + $0x84] sm:$0xff]
    %v113 = vld [vmem:[#allocation6 + $0x8c] sm:$0xf]
    %v114 = vld [vmem:[#allocation6 + $0x90] sm:$0xff]
    %v115 = vld [vmem:[#allocation6 + $0x98] sm:$0xf]
    %v116 = vld [vmem:[#allocation6 + $0x9c] sm:$0xff]
    %v117 = vld [vmem:[#allocation6 + $0xa4] sm:$0xf]
    %v118 = vld [vmem:[#allocation6 + $0xa8] sm:$0xff]
    %v119 = vld [vmem:[#allocation6 + $0xb0] sm:$0xf]
    %v120 = vld [vmem:[#allocation6 + $0xb4] sm:$0xff]
    %v121 = vld [vmem:[#allocation6 + $0xbc] sm:$0xf]
    %v122 = vld [vmem:[#allocation6 + $0xc0] sm:$0xff]
    %v123 = vld [vmem:[#allocation6 + $0xc8] sm:$0xf]
    %v124 = vld [vmem:[#allocation6 + $0xcc] sm:$0xff]
    %v125 = vld [vmem:[#allocation6 + $0xd4] sm:$0xf]
    %v126 = vld [vmem:[#allocation6 + $0xd8] sm:$0xff]
    %v127 = vld [vmem:[#allocation6 + $0xe0] sm:$0xf]
    %v128 = vld [vmem:[#allocation6 + $0xe4] sm:$0xff]
    %v129 = vld [vmem:[#allocation6 + $0xec] sm:$0xf]
    %v130 = vld [vmem:[#allocation6 + $0xf0] sm:$0xff]
    %v131 = vld [vmem:[#allocation6 + $0xf8] sm:$0xf]
    %v132 = vld [vmem:[#allocation6 + $0xfc] sm:$0xff]
    %v133 = vld [vmem:[#allocation6 + $0x104] sm:$0xf]
    %v134 = vld [vmem:[#allocation6 + $0x108] sm:$0xff]
    %v135 = vld [vmem:[#allocation6 + $0x110] sm:$0xf]
    %v136 = vld [vmem:[#allocation6 + $0x114] sm:$0xff]
    %v137 = vld [vmem:[#allocation6 + $0x11c] sm:$0xf]
    %v138 = vld [vmem:[#allocation6 + $0x120] sm:$0xff]
    %v139 = vld [vmem:[#allocation6 + $0x128] sm:$0xf]
    %v140 = vld [vmem:[#allocation6 + $0x12c] sm:$0xff]
    %v141 = vld [vmem:[#allocation6 + $0x134] sm:$0xf]
    %v142 = vld [vmem:[#allocation6 + $0x138] sm:$0xff]
    %v143 = vld [vmem:[#allocation6 + $0x140] sm:$0xf]
    %v144 = vld [vmem:[#allocation6 + $0x144] sm:$0xff]
    %v145 = vld [vmem:[#allocation6 + $0x14c] sm:$0xf]
    %v146 = vld [vmem:[#allocation6 + $0x150] sm:$0xff]
    %v147 = vld [vmem:[#allocation6 + $0x158] sm:$0xf]
    %v148 = vld [vmem:[#allocation6 + $0x15c] sm:$0xff]
    %v149 = vld [vmem:[#allocation6 + $0x164] sm:$0xf]
    %v150 = vld [vmem:[#allocation6 + $0x168] sm:$0xff]
    %v151 = vld [vmem:[#allocation6 + $0x170] sm:$0xf]
    %v152 = vld [vmem:[#allocation6 + $0x174] sm:$0xff]
    %v153 = vld [vmem:[#allocation6 + $0x17c] sm:$0xf]
    %v154 = vld [vmem:[#allocation6 + $0x180] sm:$0xff]
    %v155 = vld [vmem:[#allocation6 + $0x188] sm:$0xf]
    %v156 = vld [vmem:[#allocation6 + $0x18c] sm:$0xff]
    %v157 = vld [vmem:[#allocation6 + $0x194] sm:$0xf]
    %v158 = vld [vmem:[#allocation6 + $0x198] sm:$0xff]
    %v159 = vld [vmem:[#allocation6 + $0x1a0] sm:$0xf]
    %v160 = vld [vmem:[#allocation6 + $0x1a4] sm:$0xff]
    %v161 = vld [vmem:[#allocation6 + $0x1ac] sm:$0xf]
    %v162 = vld [vmem:[#allocation6 + $0x1b0] sm:$0xff]
    %v163 = vld [vmem:[#allocation6 + $0x1b8] sm:$0xf]
    %v164 = vld [vmem:[#allocation6 + $0x1bc] sm:$0xff]
    %v165 = vld [vmem:[#allocation6 + $0x1c4] sm:$0xf]
    %v166 = vld [vmem:[#allocation6 + $0x1c8] sm:$0xff]
    %v167 = vld [vmem:[#allocation6 + $0x1d0] sm:$0xf]
    %v168 = vld [vmem:[#allocation6 + $0x1d4] sm:$0xff]
    %v169 = vld [vmem:[#allocation6 + $0x1dc] sm:$0xf]
    %v170 = vld [vmem:[#allocation6 + $0x1e0] sm:$0xff]
    %v171 = vld [vmem:[#allocation6 + $0x1e8] sm:$0xf]
    %v172 = vld [vmem:[#allocation6 + $0x1ec] sm:$0xff]
    %v173 = vld [vmem:[#allocation6 + $0x1f4] sm:$0xf]
    %v174 = vld [vmem:[#allocation6 + $0x1f8] sm:$0xff]
    %v175 = vld [vmem:[#allocation6 + $0x200] sm:$0xf]
    %v176 = vld [vmem:[#allocation6 + $0x204] sm:$0xff]
    %v177 = vld [vmem:[#allocation6 + $0x20c] sm:$0xf]
    %v178 = vld [vmem:[#allocation6 + $0x210] sm:$0xff]
    %v179 = vld [vmem:[#allocation6 + $0x218] sm:$0xf]
    %v180 = vld [vmem:[#allocation6 + $0x21c] sm:$0xff]
    %v181 = vld [vmem:[#allocation6 + $0x224] sm:$0xf]
    %v182 = vld [vmem:[#allocation6 + $0x228] sm:$0xff]
    %v183 = vld [vmem:[#allocation6 + $0x230] sm:$0xf]
    %v184 = vld [vmem:[#allocation6 + $0x234] sm:$0xff]
    %v185 = vld [vmem:[#allocation6 + $0x23c] sm:$0xf]
    %v186 = vld [vmem:[#allocation6 + $0x240] sm:$0xff]
    %v187 = vld [vmem:[#allocation6 + $0x248] sm:$0xf]
    %v188 = vld [vmem:[#allocation6 + $0x24c] sm:$0xff]
    %v189 = vld [vmem:[#allocation6 + $0x254] sm:$0xf]
    %v190 = vld [vmem:[#allocation6 + $0x258] sm:$0xff]
    %v191 = vld [vmem:[#allocation6 + $0x260] sm:$0xf]
    %v192 = vld [vmem:[#allocation6 + $0x264] sm:$0xff]
    %v193 = vld [vmem:[#allocation6 + $0x26c] sm:$0xf]
    %v194 = vld [vmem:[#allocation6 + $0x270] sm:$0xff]
    %v195 = vld [vmem:[#allocation6 + $0x278] sm:$0xf]
    %v196 = vld [vmem:[#allocation6 + $0x27c] sm:$0xff]
    %v197 = vld [vmem:[#allocation6 + $0x284] sm:$0xf]
    %v198 = vld [vmem:[#allocation6 + $0x288] sm:$0xff]
    %v199 = vld [vmem:[#allocation6 + $0x290] sm:$0xf]
    %v200 = vld [vmem:[#allocation6 + $0x294] sm:$0xff]
    %v201 = vld [vmem:[#allocation6 + $0x29c] sm:$0xf]
    %v202 = vld [vmem:[#allocation6 + $0x2a0] sm:$0xff]
    %v203 = vld [vmem:[#allocation6 + $0x2a8] sm:$0xf]
    %v204 = vld [vmem:[#allocation6 + $0x2ac] sm:$0xff]
    %v205 = vld [vmem:[#allocation6 + $0x2b4] sm:$0xf]
    %v206 = vld [vmem:[#allocation6 + $0x2b8] sm:$0xff]
    %v207 = vld [vmem:[#allocation6 + $0x2c0] sm:$0xf]
    %v208 = vld [vmem:[#allocation6 + $0x2c4] sm:$0xff]
    %v209 = vld [vmem:[#allocation6 + $0x2cc] sm:$0xf]
    %v210 = vld [vmem:[#allocation6 + $0x2d0] sm:$0xff]
    %v211 = vld [vmem:[#allocation6 + $0x2d8] sm:$0xf]
    %v212 = vld [vmem:[#allocation6 + $0x2dc] sm:$0xff]
    %v213 = vld [vmem:[#allocation6 + $0x2e4] sm:$0xf]
    %v214 = vld [vmem:[#allocation6 + $0x2e8] sm:$0xff]
    %v215 = vld [vmem:[#allocation6 + $0x2f0] sm:$0xf]
    %v216 = vld [vmem:[#allocation6 + $0x2f4] sm:$0xff]
    %v217 = vld [vmem:[#allocation6 + $0x2fc] sm:$0xf]
    %v218 = vld [vmem:[#allocation6 + $0x300] sm:$0xff]
    %v219 = vld [vmem:[#allocation6 + $0x308] sm:$0xf]
    %v220 = vld [vmem:[#allocation6 + $0x30c] sm:$0xff]
    %v221 = vld [vmem:[#allocation6 + $0x314] sm:$0xf]
    %v222 = vld [vmem:[#allocation6 + $0x318] sm:$0xff]
    %v223 = vld [vmem:[#allocation6 + $0x320] sm:$0xf]
    %v224 = vld [vmem:[#allocation6 + $0x324] sm:$0xff]
    %v225 = vld [vmem:[#allocation6 + $0x32c] sm:$0xf]
    %v226 = vld [vmem:[#allocation6 + $0x330] sm:$0xff]
    %v227 = vld [vmem:[#allocation6 + $0x338] sm:$0xf]
    %v228 = vld [vmem:[#allocation6 + $0x33c] sm:$0xff]
    %v229 = vld [vmem:[#allocation6 + $0x344] sm:$0xf]
    %v230 = vld [vmem:[#allocation6 + $0x348] sm:$0xff]
    %v231 = vld [vmem:[#allocation6 + $0x350] sm:$0xf]
    %v232 = vld [vmem:[#allocation6 + $0x354] sm:$0xff]
    %v233 = vld [vmem:[#allocation6 + $0x35c] sm:$0xf]
    %v234 = vld [vmem:[#allocation6 + $0x360] sm:$0xff]
    %v235 = vld [vmem:[#allocation6 + $0x368] sm:$0xf]
    %v236 = vld [vmem:[#allocation6 + $0x36c] sm:$0xff]
    %v237 = vld [vmem:[#allocation6 + $0x374] sm:$0xf]
    %v238 = vld [vmem:[#allocation6 + $0x378] sm:$0xff]
    %v239 = vld [vmem:[#allocation6 + $0x380] sm:$0xf]
    %v240 = vld [vmem:[#allocation6 + $0x384] sm:$0xff]
    %v241 = vld [vmem:[#allocation6 + $0x38c] sm:$0xf]
    %v242 = vld [vmem:[#allocation6 + $0x390] sm:$0xff]
    %v243 = vld [vmem:[#allocation6 + $0x398] sm:$0xf]
    %v244 = vld [vmem:[#allocation6 + $0x39c] sm:$0xff]
    %v245 = vld [vmem:[#allocation6 + $0x3a4] sm:$0xf]
    %v246 = vld [vmem:[#allocation6 + $0x3a8] sm:$0xff]
    %v247 = vld [vmem:[#allocation6 + $0x3b0] sm:$0xf]
    %v248 = vld [vmem:[#allocation6 + $0x3b4] sm:$0xff]
    %v249 = vld [vmem:[#allocation6 + $0x3bc] sm:$0xf]
    %v250 = vld [vmem:[#allocation6 + $0x3c0] sm:$0xff]
    %v251 = vld [vmem:[#allocation6 + $0x3c8] sm:$0xf]
    %v252 = vld [vmem:[#allocation6 + $0x3cc] sm:$0xff]
    %v253 = vld [vmem:[#allocation6 + $0x3d4] sm:$0xf]
    %v254 = vld [vmem:[#allocation6 + $0x3d8] sm:$0xff]
    %v255 = vld [vmem:[#allocation6 + $0x3e0] sm:$0xf]
    %v256 = vld [vmem:[#allocation6 + $0x3e4] sm:$0xff]
    %v257 = vld [vmem:[#allocation6 + $0x3ec] sm:$0xf]
    %v258 = vld [vmem:[#allocation6 + $0x3f0] sm:$0xff]
    %v259 = vld [vmem:[#allocation6 + $0x3f8] sm:$0xf]
    %v260 = vld [vmem:[#allocation6 + $0x3fc] sm:$0xff]
    %v261 = vld [vmem:[#allocation6 + $0x404] sm:$0xf]
    %v262 = vld [vmem:[#allocation6 + $0x408] sm:$0xff]
    %v263 = vld [vmem:[#allocation6 + $0x410] sm:$0xf]
    %v264 = vld [vmem:[#allocation6 + $0x414] sm:$0xff]
    %v265 = vld [vmem:[#allocation6 + $0x41c] sm:$0xf]
    %v266 = vld [vmem:[#allocation6 + $0x420] sm:$0xff]
    %v267 = vld [vmem:[#allocation6 + $0x428] sm:$0xf]
    %v268 = vld [vmem:[#allocation6 + $0x42c] sm:$0xff]
    %v269 = vld [vmem:[#allocation6 + $0x434] sm:$0xf]
    %v270 = vld [vmem:[#allocation6 + $0x438] sm:$0xff]
    %v271 = vld [vmem:[#allocation6 + $0x440] sm:$0xf]
    %v272 = vld [vmem:[#allocation6 + $0x444] sm:$0xff]
    %v273 = vld [vmem:[#allocation6 + $0x44c] sm:$0xf]
    %v274 = vld [vmem:[#allocation6 + $0x450] sm:$0xff]
    %v275 = vld [vmem:[#allocation6 + $0x458] sm:$0xf]
    %v276 = vld [vmem:[#allocation6 + $0x45c] sm:$0xff]
    %v277 = vld [vmem:[#allocation6 + $0x464] sm:$0xf]
    %v278 = vld [vmem:[#allocation6 + $0x468] sm:$0xff]
    %v279 = vld [vmem:[#allocation6 + $0x470] sm:$0xf]
    %v280 = vld [vmem:[#allocation6 + $0x474] sm:$0xff]
    %v281 = vld [vmem:[#allocation6 + $0x47c] sm:$0xf]
    %v282 = vld [vmem:[#allocation6 + $0x480] sm:$0xff]
    %v283 = vld [vmem:[#allocation6 + $0x488] sm:$0xf]
    %v284 = vld [vmem:[#allocation6 + $0x48c] sm:$0xff]
    %v285 = vld [vmem:[#allocation6 + $0x494] sm:$0xf]
    %v286 = vld [vmem:[#allocation6 + $0x498] sm:$0xff]
    %v287 = vld [vmem:[#allocation6 + $0x4a0] sm:$0xf]
    %v288 = vld [vmem:[#allocation6 + $0x4a4] sm:$0xff]
    %v289 = vld [vmem:[#allocation6 + $0x4ac] sm:$0xf]
    %v290 = vld [vmem:[#allocation6 + $0x4b0] sm:$0xff]
    %v291 = vld [vmem:[#allocation6 + $0x4b8] sm:$0xf]
    %v292 = vld [vmem:[#allocation6 + $0x4bc] sm:$0xff]
    %v293 = vld [vmem:[#allocation6 + $0x4c4] sm:$0xf]
    %v294 = vld [vmem:[#allocation6 + $0x4c8] sm:$0xff]
    %v295 = vld [vmem:[#allocation6 + $0x4d0] sm:$0xf]
    %v296 = vld [vmem:[#allocation6 + $0x4d4] sm:$0xff]
    %v297 = vld [vmem:[#allocation6 + $0x4dc] sm:$0xf]
    %v298 = vld [vmem:[#allocation6 + $0x4e0] sm:$0xff]
    %v299 = vld [vmem:[#allocation6 + $0x4e8] sm:$0xf]
    %v300 = vld [vmem:[#allocation6 + $0x4ec] sm:$0xff]
    %v301 = vld [vmem:[#allocation6 + $0x4f4] sm:$0xf]
    %v302 = vld [vmem:[#allocation6 + $0x4f8] sm:$0xff]
    %v303 = vld [vmem:[#allocation6 + $0x500] sm:$0xf]
    %v304 = vld [vmem:[#allocation6 + $0x504] sm:$0xff]
    %v305 = vld [vmem:[#allocation6 + $0x50c] sm:$0xf]
    %v306 = vld [vmem:[#allocation6 + $0x510] sm:$0xff]
    %v307 = vld [vmem:[#allocation6 + $0x518] sm:$0xf]
    %v308 = vld [vmem:[#allocation6 + $0x51c] sm:$0xff]
    %v309 = vld [vmem:[#allocation6 + $0x524] sm:$0xf]
    %v310 = vld [vmem:[#allocation6 + $0x528] sm:$0xff]
    %v311 = vld [vmem:[#allocation6 + $0x530] sm:$0xf]
    %v312 = vld [vmem:[#allocation6 + $0x534] sm:$0xff]
    %v313 = vld [vmem:[#allocation6 + $0x53c] sm:$0xf]
    %v314 = vld [vmem:[#allocation6 + $0x540] sm:$0xff]
    %v315 = vld [vmem:[#allocation6 + $0x548] sm:$0xf]
    %v316 = vld [vmem:[#allocation6 + $0x54c] sm:$0xff]
    %v317 = vld [vmem:[#allocation6 + $0x554] sm:$0xf]
    %v318 = vld [vmem:[#allocation6 + $0x558] sm:$0xff]
    %v319 = vld [vmem:[#allocation6 + $0x560] sm:$0xf]
    %v320 = vld [vmem:[#allocation6 + $0x564] sm:$0xff]
    %v321 = vld [vmem:[#allocation6 + $0x56c] sm:$0xf]
    %v322 = vld [vmem:[#allocation6 + $0x570] sm:$0xff]
    %v323 = vld [vmem:[#allocation6 + $0x578] sm:$0xf]
    %v324 = vld [vmem:[#allocation6 + $0x57c] sm:$0xff]
    %v325 = vld [vmem:[#allocation6 + $0x584] sm:$0xf]
    %v326 = vld [vmem:[#allocation6 + $0x588] sm:$0xff]
    %v327 = vld [vmem:[#allocation6 + $0x590] sm:$0xf]
    %v328 = vld [vmem:[#allocation6 + $0x594] sm:$0xff]
    %v329 = vld [vmem:[#allocation6 + $0x59c] sm:$0xf]
    %v330 = vld [vmem:[#allocation6 + $0x5a0] sm:$0xff]
    %v331 = vld [vmem:[#allocation6 + $0x5a8] sm:$0xf]
    %v332 = vld [vmem:[#allocation6 + $0x5ac] sm:$0xff]
    %v333 = vld [vmem:[#allocation6 + $0x5b4] sm:$0xf]
    %v334 = vld [vmem:[#allocation6 + $0x5b8] sm:$0xff]
    %v335 = vld [vmem:[#allocation6 + $0x5c0] sm:$0xf]
    %v336 = vld [vmem:[#allocation6 + $0x5c4] sm:$0xff]
    %v337 = vld [vmem:[#allocation6 + $0x5cc] sm:$0xf]
    %v338 = vld [vmem:[#allocation6 + $0x5d0] sm:$0xff]
    %v339 = vld [vmem:[#allocation6 + $0x5d8] sm:$0xf]
    %v340 = vld [vmem:[#allocation6 + $0x5dc] sm:$0xff]
    %v341 = vld [vmem:[#allocation6 + $0x5e4] sm:$0xf]
    %v342 = vld [vmem:[#allocation6 + $0x5e8] sm:$0xff]
    %v343 = vld [vmem:[#allocation6 + $0x5f0] sm:$0xf]
    %v344 = vld [vmem:[#allocation6 + $0x5f4] sm:$0xff]
    %v345 = vld [vmem:[#allocation6 + $0x5fc] sm:$0xf]
    %v350 = vunpack.c.l.b16 %v86
    %v351 = vunpack.c.h.b16 %v86
    %v352 = vunpack.c.l.b16 %v87
    %v353 = vunpack.c.h.b16 %v87
    %v354 = vunpack.c.l.b16 %v88
    %v355 = vunpack.c.h.b16 %v88
    %v356 = vunpack.c.l.b16 %v89
    %v357 = vunpack.c.h.b16 %v89
    %v358 = vpack.c.b16 %v350, %v350
    %v359 = vpack.c.b16 %v351, %v351
    %v360 = vpack.c.b16 %v352, %v352
    %v361 = vpack.c.b16 %v353, %v353
    %v362 = vpack.c.b16 %v354, %v354
    %v363 = vpack.c.b16 %v355, %v355
    %v364 = vpack.c.b16 %v356, %v356
    %v365 = vpack.c.b16 %v357, %v357
    %v630 = vunpack.c.l.b16 %v90
    %v631 = vunpack.c.h.b16 %v90
    %v632 = vunpack.c.l.b16 %v91
    %v633 = vunpack.c.l.b16 %v92
    %v634 = vunpack.c.h.b16 %v92
    %v635 = vunpack.c.l.b16 %v93
    %v636 = vunpack.c.l.b16 %v94
    %v637 = vunpack.c.h.b16 %v94
    %v638 = vunpack.c.l.b16 %v95
    %v639 = vunpack.c.l.b16 %v96
    %v640 = vunpack.c.h.b16 %v96
    %v641 = vunpack.c.l.b16 %v97
    %v642 = vunpack.c.l.b16 %v98
    %v643 = vunpack.c.h.b16 %v98
    %v644 = vunpack.c.l.b16 %v99
    %v645 = vunpack.c.l.b16 %v100
    %v646 = vunpack.c.h.b16 %v100
    %v647 = vunpack.c.l.b16 %v101
    %v648 = vunpack.c.l.b16 %v102
    %v649 = vunpack.c.h.b16 %v102
    %v650 = vunpack.c.l.b16 %v103
    %v651 = vunpack.c.l.b16 %v104
    %v652 = vunpack.c.h.b16 %v104
    %v653 = vunpack.c.l.b16 %v105
    %v654 = vunpack.c.l.b16 %v106
    %v655 = vunpack.c.h.b16 %v106
    %v656 = vunpack.c.l.b16 %v107
    %v657 = vunpack.c.l.b16 %v108
    %v658 = vunpack.c.h.b16 %v108
    %v659 = vunpack.c.l.b16 %v109
    %v660 = vunpack.c.l.b16 %v110
    %v661 = vunpack.c.h.b16 %v110
    %v662 = vunpack.c.l.b16 %v111
    %v663 = vunpack.c.l.b16 %v112
    %v664 = vunpack.c.h.b16 %v112
    %v665 = vunpack.c.l.b16 %v113
    %v666 = vunpack.c.l.b16 %v114
    %v667 = vunpack.c.h.b16 %v114
    %v668 = vunpack.c.l.b16 %v115
    %v669 = vunpack.c.l.b16 %v116
    %v670 = vunpack.c.h.b16 %v116
    %v671 = vunpack.c.l.b16 %v117
    %v672 = vunpack.c.l.b16 %v118
    %v673 = vunpack.c.h.b16 %v118
    %v674 = vunpack.c.l.b16 %v119
    %v675 = vunpack.c.l.b16 %v120
    %v676 = vunpack.c.h.b16 %v120
    %v677 = vunpack.c.l.b16 %v121
    %v678 = vunpack.c.l.b16 %v122
    %v679 = vunpack.c.h.b16 %v122
    %v680 = vunpack.c.l.b16 %v123
    %v681 = vunpack.c.l.b16 %v124
    %v682 = vunpack.c.h.b16 %v124
    %v683 = vunpack.c.l.b16 %v125
    %v684 = vunpack.c.l.b16 %v126
    %v685 = vunpack.c.h.b16 %v126
    %v686 = vunpack.c.l.b16 %v127
    %v687 = vunpack.c.l.b16 %v128
    %v688 = vunpack.c.h.b16 %v128
    %v689 = vunpack.c.l.b16 %v129
    %v690 = vunpack.c.l.b16 %v130
    %v691 = vunpack.c.h.b16 %v130
    %v692 = vunpack.c.l.b16 %v131
    %v693 = vunpack.c.l.b16 %v132
    %v694 = vunpack.c.h.b16 %v132
    %v695 = vunpack.c.l.b16 %v133
    %v696 = vunpack.c.l.b16 %v134
    %v697 = vunpack.c.h.b16 %v134
    %v698 = vunpack.c.l.b16 %v135
    %v699 = vunpack.c.l.b16 %v136
    %v700 = vunpack.c.h.b16 %v136
    %v701 = vunpack.c.l.b16 %v137
    %v702 = vunpack.c.l.b16 %v138
    %v703 = vunpack.c.h.b16 %v138
    %v704 = vunpack.c.l.b16 %v139
    %v705 = vunpack.c.l.b16 %v140
    %v706 = vunpack.c.h.b16 %v140
    %v707 = vunpack.c.l.b16 %v141
    %v708 = vunpack.c.l.b16 %v142
    %v709 = vunpack.c.h.b16 %v142
    %v710 = vunpack.c.l.b16 %v143
    %v711 = vunpack.c.l.b16 %v144
    %v712 = vunpack.c.h.b16 %v144
    %v713 = vunpack.c.l.b16 %v145
    %v714 = vunpack.c.l.b16 %v146
    %v715 = vunpack.c.h.b16 %v146
    %v716 = vunpack.c.l.b16 %v147
    %v717 = vunpack.c.l.b16 %v148
    %v718 = vunpack.c.h.b16 %v148
    %v719 = vunpack.c.l.b16 %v149
    %v720 = vunpack.c.l.b16 %v150
    %v721 = vunpack.c.h.b16 %v150
    %v722 = vunpack.c.l.b16 %v151
    %v723 = vunpack.c.l.b16 %v152
    %v724 = vunpack.c.h.b16 %v152
    %v725 = vunpack.c.l.b16 %v153
    %v726 = vunpack.c.l.b16 %v154
    %v727 = vunpack.c.h.b16 %v154
    %v728 = vunpack.c.l.b16 %v155
    %v729 = vunpack.c.l.b16 %v156
    %v730 = vunpack.c.h.b16 %v156
    %v731 = vunpack.c.l.b16 %v157
    %v732 = vunpack.c.l.b16 %v158
    %v733 = vunpack.c.h.b16 %v158
    %v734 = vunpack.c.l.b16 %v159
    %v735 = vunpack.c.l.b16 %v160
    %v736 = vunpack.c.h.b16 %v160
    %v737 = vunpack.c.l.b16 %v161
    %v738 = vunpack.c.l.b16 %v162
    %v739 = vunpack.c.h.b16 %v162
    %v740 = vunpack.c.l.b16 %v163
    %v741 = vunpack.c.l.b16 %v164
    %v742 = vunpack.c.h.b16 %v164
    %v743 = vunpack.c.l.b16 %v165
    %v744 = vunpack.c.l.b16 %v166
    %v745 = vunpack.c.h.b16 %v166
    %v746 = vunpack.c.l.b16 %v167
    %v747 = vunpack.c.l.b16 %v168
    %v748 = vunpack.c.h.b16 %v168
    %v749 = vunpack.c.l.b16 %v169
    %v750 = vunpack.c.l.b16 %v170
    %v751 = vunpack.c.h.b16 %v170
    %v752 = vunpack.c.l.b16 %v171
    %v753 = vunpack.c.l.b16 %v172
    %v754 = vunpack.c.h.b16 %v172
    %v755 = vunpack.c.l.b16 %v173
    %v756 = vunpack.c.l.b16 %v174
    %v757 = vunpack.c.h.b16 %v174
    %v758 = vunpack.c.l.b16 %v175
    %v759 = vunpack.c.l.b16 %v176
    %v760 = vunpack.c.h.b16 %v176
    %v761 = vunpack.c.l.b16 %v177
    %v762 = vunpack.c.l.b16 %v178
    %v763 = vunpack.c.h.b16 %v178
    %v764 = vunpack.c.l.b16 %v179
    %v765 = vunpack.c.l.b16 %v180
    %v766 = vunpack.c.h.b16 %v180
    %v767 = vunpack.c.l.b16 %v181
    %v768 = vunpack.c.l.b16 %v182
    %v769 = vunpack.c.h.b16 %v182
    %v770 = vunpack.c.l.b16 %v183
    %v771 = vunpack.c.l.b16 %v184
    %v772 = vunpack.c.h.b16 %v184
    %v773 = vunpack.c.l.b16 %v185
    %v774 = vunpack.c.l.b16 %v186
    %v775 = vunpack.c.h.b16 %v186
    %v776 = vunpack.c.l.b16 %v187
    %v777 = vunpack.c.l.b16 %v188
    %v778 = vunpack.c.h.b16 %v188
    %v779 = vunpack.c.l.b16 %v189
    %v780 = vunpack.c.l.b16 %v190
    %v781 = vunpack.c.h.b16 %v190
    %v782 = vunpack.c.l.b16 %v191
    %v783 = vunpack.c.l.b16 %v192
    %v784 = vunpack.c.h.b16 %v192
    %v785 = vunpack.c.l.b16 %v193
    %v786 = vunpack.c.l.b16 %v194
    %v787 = vunpack.c.h.b16 %v194
    %v788 = vunpack.c.l.b16 %v195
    %v789 = vunpack.c.l.b16 %v196
    %v790 = vunpack.c.h.b16 %v196
    %v791 = vunpack.c.l.b16 %v197
    %v792 = vunpack.c.l.b16 %v198
    %v793 = vunpack.c.h.b16 %v198
    %v794 = vunpack.c.l.b16 %v199
    %v795 = vunpack.c.l.b16 %v200
    %v796 = vunpack.c.h.b16 %v200
    %v797 = vunpack.c.l.b16 %v201
    %v798 = vunpack.c.l.b16 %v202
    %v799 = vunpack.c.h.b16 %v202
    %v800 = vunpack.c.l.b16 %v203
    %v801 = vunpack.c.l.b16 %v204
    %v802 = vunpack.c.h.b16 %v204
    %v803 = vunpack.c.l.b16 %v205
    %v804 = vunpack.c.l.b16 %v206
    %v805 = vunpack.c.h.b16 %v206
    %v806 = vunpack.c.l.b16 %v207
    %v807 = vunpack.c.l.b16 %v208
    %v808 = vunpack.c.h.b16 %v208
    %v809 = vunpack.c.l.b16 %v209
    %v810 = vunpack.c.l.b16 %v210
    %v811 = vunpack.c.h.b16 %v210
    %v812 = vunpack.c.l.b16 %v211
    %v813 = vunpack.c.l.b16 %v212
    %v814 = vunpack.c.h.b16 %v212
    %v815 = vunpack.c.l.b16 %v213
    %v816 = vunpack.c.l.b16 %v214
    %v817 = vunpack.c.h.b16 %v214
    %v818 = vunpack.c.l.b16 %v215
    %v819 = vunpack.c.l.b16 %v216
    %v820 = vunpack.c.h.b16 %v216
    %v821 = vunpack.c.l.b16 %v217
    %v822 = vunpack.c.l.b16 %v218
    %v823 = vunpack.c.h.b16 %v218
    %v824 = vunpack.c.l.b16 %v219
    %v825 = vunpack.c.l.b16 %v220
    %v826 = vunpack.c.h.b16 %v220
    %v827 = vunpack.c.l.b16 %v221
    %v828 = vunpack.c.l.b16 %v222
    %v829 = vunpack.c.h.b16 %v222
    %v830 = vunpack.c.l.b16 %v223
    %v831 = vunpack.c.l.b16 %v224
    %v832 = vunpack.c.h.b16 %v224
    %v833 = vunpack.c.l.b16 %v225
    %v834 = vunpack.c.l.b16 %v226
    %v835 = vunpack.c.h.b16 %v226
    %v836 = vunpack.c.l.b16 %v227
    %v837 = vunpack.c.l.b16 %v228
    %v838 = vunpack.c.h.b16 %v228
    %v839 = vunpack.c.l.b16 %v229
    %v840 = vunpack.c.l.b16 %v230
    %v841 = vunpack.c.h.b16 %v230
    %v842 = vunpack.c.l.b16 %v231
    %v843 = vunpack.c.l.b16 %v232
    %v844 = vunpack.c.h.b16 %v232
    %v845 = vunpack.c.l.b16 %v233
    %v846 = vunpack.c.l.b16 %v234
    %v847 = vunpack.c.h.b16 %v234
    %v848 = vunpack.c.l.b16 %v235
    %v849 = vunpack.c.l.b16 %v236
    %v850 = vunpack.c.h.b16 %v236
    %v851 = vunpack.c.l.b16 %v237
    %v852 = vunpack.c.l.b16 %v238
    %v853 = vunpack.c.h.b16 %v238
    %v854 = vunpack.c.l.b16 %v239
    %v855 = vunpack.c.l.b16 %v240
    %v856 = vunpack.c.h.b16 %v240
    %v857 = vunpack.c.l.b16 %v241
    %v858 = vunpack.c.l.b16 %v242
    %v859 = vunpack.c.h.b16 %v242
    %v860 = vunpack.c.l.b16 %v243
    %v861 = vunpack.c.l.b16 %v244
    %v862 = vunpack.c.h.b16 %v244
    %v863 = vunpack.c.l.b16 %v245
    %v864 = vunpack.c.l.b16 %v246
    %v865 = vunpack.c.h.b16 %v246
    %v866 = vunpack.c.l.b16 %v247
    %v867 = vunpack.c.l.b16 %v248
    %v868 = vunpack.c.h.b16 %v248
    %v869 = vunpack.c.l.b16 %v249
    %v870 = vunpack.c.l.b16 %v250
    %v871 = vunpack.c.h.b16 %v250
    %v872 = vunpack.c.l.b16 %v251
    %v873 = vunpack.c.l.b16 %v252
    %v874 = vunpack.c.h.b16 %v252
    %v875 = vunpack.c.l.b16 %v253
    %v876 = vunpack.c.l.b16 %v254
    %v877 = vunpack.c.h.b16 %v254
    %v878 = vunpack.c.l.b16 %v255
    %v879 = vunpack.c.l.b16 %v256
    %v880 = vunpack.c.h.b16 %v256
    %v881 = vunpack.c.l.b16 %v257
    %v882 = vunpack.c.l.b16 %v258
    %v883 = vunpack.c.h.b16 %v258
    %v884 = vunpack.c.l.b16 %v259
    %v885 = vunpack.c.l.b16 %v260
    %v886 = vunpack.c.h.b16 %v260
    %v887 = vunpack.c.l.b16 %v261
    %v888 = vunpack.c.l.b16 %v262
    %v889 = vunpack.c.h.b16 %v262
    %v890 = vunpack.c.l.b16 %v263
    %v891 = vunpack.c.l.b16 %v264
    %v892 = vunpack.c.h.b16 %v264
    %v893 = vunpack.c.l.b16 %v265
    %v894 = vunpack.c.l.b16 %v266
    %v895 = vunpack.c.h.b16 %v266
    %v896 = vunpack.c.l.b16 %v267
    %v897 = vunpack.c.l.b16 %v268
    %v898 = vunpack.c.h.b16 %v268
    %v899 = vunpack.c.l.b16 %v269
    %v900 = vunpack.c.l.b16 %v270
    %v901 = vunpack.c.h.b16 %v270
    %v902 = vunpack.c.l.b16 %v271
    %v903 = vunpack.c.l.b16 %v272
    %v904 = vunpack.c.h.b16 %v272
    %v905 = vunpack.c.l.b16 %v273
    %v906 = vunpack.c.l.b16 %v274
    %v907 = vunpack.c.h.b16 %v274
    %v908 = vunpack.c.l.b16 %v275
    %v909 = vunpack.c.l.b16 %v276
    %v910 = vunpack.c.h.b16 %v276
    %v911 = vunpack.c.l.b16 %v277
    %v912 = vunpack.c.l.b16 %v278
    %v913 = vunpack.c.h.b16 %v278
    %v914 = vunpack.c.l.b16 %v279
    %v915 = vunpack.c.l.b16 %v280
    %v916 = vunpack.c.h.b16 %v280
    %v917 = vunpack.c.l.b16 %v281
    %v918 = vunpack.c.l.b16 %v282
    %v919 = vunpack.c.h.b16 %v282
    %v920 = vunpack.c.l.b16 %v283
    %v921 = vunpack.c.l.b16 %v284
    %v922 = vunpack.c.h.b16 %v284
    %v923 = vunpack.c.l.b16 %v285
    %v924 = vunpack.c.l.b16 %v286
    %v925 = vunpack.c.h.b16 %v286
    %v926 = vunpack.c.l.b16 %v287
    %v927 = vunpack.c.l.b16 %v288
    %v928 = vunpack.c.h.b16 %v288
    %v929 = vunpack.c.l.b16 %v289
    %v930 = vunpack.c.l.b16 %v290
    %v931 = vunpack.c.h.b16 %v290
    %v932 = vunpack.c.l.b16 %v291
    %v933 = vunpack.c.l.b16 %v292
    %v934 = vunpack.c.h.b16 %v292
    %v935 = vunpack.c.l.b16 %v293
    %v936 = vunpack.c.l.b16 %v294
    %v937 = vunpack.c.h.b16 %v294
    %v938 = vunpack.c.l.b16 %v295
    %v939 = vunpack.c.l.b16 %v296
    %v940 = vunpack.c.h.b16 %v296
    %v941 = vunpack.c.l.b16 %v297
    %v942 = vunpack.c.l.b16 %v298
    %v943 = vunpack.c.h.b16 %v298
    %v944 = vunpack.c.l.b16 %v299
    %v945 = vunpack.c.l.b16 %v300
    %v946 = vunpack.c.h.b16 %v300
    %v947 = vunpack.c.l.b16 %v301
    %v948 = vunpack.c.l.b16 %v302
    %v949 = vunpack.c.h.b16 %v302
    %v950 = vunpack.c.l.b16 %v303
    %v951 = vunpack.c.l.b16 %v304
    %v952 = vunpack.c.h.b16 %v304
    %v953 = vunpack.c.l.b16 %v305
    %v954 = vunpack.c.l.b16 %v306
    %v955 = vunpack.c.h.b16 %v306
    %v956 = vunpack.c.l.b16 %v307
    %v957 = vunpack.c.l.b16 %v308
    %v958 = vunpack.c.h.b16 %v308
    %v959 = vunpack.c.l.b16 %v309
    %v960 = vunpack.c.l.b16 %v310
    %v961 = vunpack.c.h.b16 %v310
    %v962 = vunpack.c.l.b16 %v311
    %v963 = vunpack.c.l.b16 %v312
    %v964 = vunpack.c.h.b16 %v312
    %v965 = vunpack.c.l.b16 %v313
    %v966 = vunpack.c.l.b16 %v314
    %v967 = vunpack.c.h.b16 %v314
    %v968 = vunpack.c.l.b16 %v315
    %v969 = vunpack.c.l.b16 %v316
    %v970 = vunpack.c.h.b16 %v316
    %v971 = vunpack.c.l.b16 %v317
    %v972 = vunpack.c.l.b16 %v318
    %v973 = vunpack.c.h.b16 %v318
    %v974 = vunpack.c.l.b16 %v319
    %v975 = vunpack.c.l.b16 %v320
    %v976 = vunpack.c.h.b16 %v320
    %v977 = vunpack.c.l.b16 %v321
    %v978 = vunpack.c.l.b16 %v322
    %v979 = vunpack.c.h.b16 %v322
    %v980 = vunpack.c.l.b16 %v323
    %v981 = vunpack.c.l.b16 %v324
    %v982 = vunpack.c.h.b16 %v324
    %v983 = vunpack.c.l.b16 %v325
    %v984 = vunpack.c.l.b16 %v326
    %v985 = vunpack.c.h.b16 %v326
    %v986 = vunpack.c.l.b16 %v327
    %v987 = vunpack.c.l.b16 %v328
    %v988 = vunpack.c.h.b16 %v328
    %v989 = vunpack.c.l.b16 %v329
    %v990 = vunpack.c.l.b16 %v330
    %v991 = vunpack.c.h.b16 %v330
    %v992 = vunpack.c.l.b16 %v331
    %v993 = vunpack.c.l.b16 %v332
    %v994 = vunpack.c.h.b16 %v332
    %v995 = vunpack.c.l.b16 %v333
    %v996 = vunpack.c.l.b16 %v334
    %v997 = vunpack.c.h.b16 %v334
    %v998 = vunpack.c.l.b16 %v335
    %v999 = vunpack.c.l.b16 %v336
    %v1000 = vunpack.c.h.b16 %v336
    %v1001 = vunpack.c.l.b16 %v337
    %v1002 = vunpack.c.l.b16 %v338
    %v1003 = vunpack.c.h.b16 %v338
    %v1004 = vunpack.c.l.b16 %v339
    %v1005 = vunpack.c.l.b16 %v340
    %v1006 = vunpack.c.h.b16 %v340
    %v1007 = vunpack.c.l.b16 %v341
    %v1008 = vunpack.c.l.b16 %v342
    %v1009 = vunpack.c.h.b16 %v342
    %v1010 = vunpack.c.l.b16 %v343
    %v1011 = vunpack.c.l.b16 %v344
    %v1012 = vunpack.c.h.b16 %v344
    %v1013 = vunpack.c.l.b16 %v345
    %v1014 = vpack.c.b16 %v633, %v630
    %v1015 = vpack.c.b16 %v634, %v631
    %v1016 = vpack.c.b16 %v635, %v632
    %v1017 = vpack.c.b16 %v639, %v636
    %v1018 = vpack.c.b16 %v640, %v637
    %v1019 = vpack.c.b16 %v641, %v638
    %v1020 = vpack.c.b16 %v645, %v642
    %v1021 = vpack.c.b16 %v646, %v643
    %v1022 = vpack.c.b16 %v647, %v644
    %v1023 = vpack.c.b16 %v651, %v648
    %v1024 = vpack.c.b16 %v652, %v649
    %v1025 = vpack.c.b16 %v653, %v650
    %v1026 = vpack.c.b16 %v657, %v654
    %v1027 = vpack.c.b16 %v658, %v655
    %v1028 = vpack.c.b16 %v659, %v656
    %v1029 = vpack.c.b16 %v663, %v660
    %v1030 = vpack.c.b16 %v664, %v661
    %v1031 = vpack.c.b16 %v665, %v662
    %v1032 = vpack.c.b16 %v669, %v666
    %v1033 = vpack.c.b16 %v670, %v667
    %v1034 = vpack.c.b16 %v671, %v668
    %v1035 = vpack.c.b16 %v675, %v672
    %v1036 = vpack.c.b16 %v676, %v673
    %v1037 = vpack.c.b16 %v677, %v674
    %v1038 = vpack.c.b16 %v681, %v678
    %v1039 = vpack.c.b16 %v682, %v679
    %v1040 = vpack.c.b16 %v683, %v680
    %v1041 = vpack.c.b16 %v687, %v684
    %v1042 = vpack.c.b16 %v688, %v685
    %v1043 = vpack.c.b16 %v689, %v686
    %v1044 = vpack.c.b16 %v693, %v690
    %v1045 = vpack.c.b16 %v694, %v691
    %v1046 = vpack.c.b16 %v695, %v692
    %v1047 = vpack.c.b16 %v699, %v696
    %v1048 = vpack.c.b16 %v700, %v697
    %v1049 = vpack.c.b16 %v701, %v698
    %v1050 = vpack.c.b16 %v705, %v702
    %v1051 = vpack.c.b16 %v706, %v703
    %v1052 = vpack.c.b16 %v707, %v704
    %v1053 = vpack.c.b16 %v711, %v708
    %v1054 = vpack.c.b16 %v712, %v709
    %v1055 = vpack.c.b16 %v713, %v710
    %v1056 = vpack.c.b16 %v717, %v714
    %v1057 = vpack.c.b16 %v718, %v715
    %v1058 = vpack.c.b16 %v719, %v716
    %v1059 = vpack.c.b16 %v723, %v720
    %v1060 = vpack.c.b16 %v724, %v721
    %v1061 = vpack.c.b16 %v725, %v722
    %v1062 = vpack.c.b16 %v729, %v726
    %v1063 = vpack.c.b16 %v730, %v727
    %v1064 = vpack.c.b16 %v731, %v728
    %v1065 = vpack.c.b16 %v735, %v732
    %v1066 = vpack.c.b16 %v736, %v733
    %v1067 = vpack.c.b16 %v737, %v734
    %v1068 = vpack.c.b16 %v741, %v738
    %v1069 = vpack.c.b16 %v742, %v739
    %v1070 = vpack.c.b16 %v743, %v740
    %v1071 = vpack.c.b16 %v747, %v744
    %v1072 = vpack.c.b16 %v748, %v745
    %v1073 = vpack.c.b16 %v749, %v746
    %v1074 = vpack.c.b16 %v753, %v750
    %v1075 = vpack.c.b16 %v754, %v751
    %v1076 = vpack.c.b16 %v755, %v752
    %v1077 = vpack.c.b16 %v759, %v756
    %v1078 = vpack.c.b16 %v760, %v757
    %v1079 = vpack.c.b16 %v761, %v758
    %v1080 = vpack.c.b16 %v765, %v762
    %v1081 = vpack.c.b16 %v766, %v763
    %v1082 = vpack.c.b16 %v767, %v764
    %v1083 = vpack.c.b16 %v771, %v768
    %v1084 = vpack.c.b16 %v772, %v769
    %v1085 = vpack.c.b16 %v773, %v770
    %v1086 = vpack.c.b16 %v777, %v774
    %v1087 = vpack.c.b16 %v778, %v775
    %v1088 = vpack.c.b16 %v779, %v776
    %v1089 = vpack.c.b16 %v783, %v780
    %v1090 = vpack.c.b16 %v784, %v781
    %v1091 = vpack.c.b16 %v785, %v782
    %v1092 = vpack.c.b16 %v789, %v786
    %v1093 = vpack.c.b16 %v790, %v787
    %v1094 = vpack.c.b16 %v791, %v788
    %v1095 = vpack.c.b16 %v795, %v792
    %v1096 = vpack.c.b16 %v796, %v793
    %v1097 = vpack.c.b16 %v797, %v794
    %v1098 = vpack.c.b16 %v801, %v798
    %v1099 = vpack.c.b16 %v802, %v799
    %v1100 = vpack.c.b16 %v803, %v800
    %v1101 = vpack.c.b16 %v807, %v804
    %v1102 = vpack.c.b16 %v808, %v805
    %v1103 = vpack.c.b16 %v809, %v806
    %v1104 = vpack.c.b16 %v813, %v810
    %v1105 = vpack.c.b16 %v814, %v811
    %v1106 = vpack.c.b16 %v815, %v812
    %v1107 = vpack.c.b16 %v819, %v816
    %v1108 = vpack.c.b16 %v820, %v817
    %v1109 = vpack.c.b16 %v821, %v818
    %v1110 = vpack.c.b16 %v825, %v822
    %v1111 = vpack.c.b16 %v826, %v823
    %v1112 = vpack.c.b16 %v827, %v824
    %v1113 = vpack.c.b16 %v831, %v828
    %v1114 = vpack.c.b16 %v832, %v829
    %v1115 = vpack.c.b16 %v833, %v830
    %v1116 = vpack.c.b16 %v837, %v834
    %v1117 = vpack.c.b16 %v838, %v835
    %v1118 = vpack.c.b16 %v839, %v836
    %v1119 = vpack.c.b16 %v843, %v840
    %v1120 = vpack.c.b16 %v844, %v841
    %v1121 = vpack.c.b16 %v845, %v842
    %v1122 = vpack.c.b16 %v849, %v846
    %v1123 = vpack.c.b16 %v850, %v847
    %v1124 = vpack.c.b16 %v851, %v848
    %v1125 = vpack.c.b16 %v855, %v852
    %v1126 = vpack.c.b16 %v856, %v853
    %v1127 = vpack.c.b16 %v857, %v854
    %v1128 = vpack.c.b16 %v861, %v858
    %v1129 = vpack.c.b16 %v862, %v859
    %v1130 = vpack.c.b16 %v863, %v860
    %v1131 = vpack.c.b16 %v867, %v864
    %v1132 = vpack.c.b16 %v868, %v865
    %v1133 = vpack.c.b16 %v869, %v866
    %v1134 = vpack.c.b16 %v873, %v870
    %v1135 = vpack.c.b16 %v874, %v871
    %v1136 = vpack.c.b16 %v875, %v872
    %v1137 = vpack.c.b16 %v879, %v876
    %v1138 = vpack.c.b16 %v880, %v877
    %v1139 = vpack.c.b16 %v881, %v878
    %v1140 = vpack.c.b16 %v885, %v882
    %v1141 = vpack.c.b16 %v886, %v883
    %v1142 = vpack.c.b16 %v887, %v884
    %v1143 = vpack.c.b16 %v891, %v888
    %v1144 = vpack.c.b16 %v892, %v889
    %v1145 = vpack.c.b16 %v893, %v890
    %v1146 = vpack.c.b16 %v897, %v894
    %v1147 = vpack.c.b16 %v898, %v895
    %v1148 = vpack.c.b16 %v899, %v896
    %v1149 = vpack.c.b16 %v903, %v900
    %v1150 = vpack.c.b16 %v904, %v901
    %v1151 = vpack.c.b16 %v905, %v902
    %v1152 = vpack.c.b16 %v909, %v906
    %v1153 = vpack.c.b16 %v910, %v907
    %v1154 = vpack.c.b16 %v911, %v908
    %v1155 = vpack.c.b16 %v915, %v912
    %v1156 = vpack.c.b16 %v916, %v913
    %v1157 = vpack.c.b16 %v917, %v914
    %v1158 = vpack.c.b16 %v921, %v918
    %v1159 = vpack.c.b16 %v922, %v919
    %v1160 = vpack.c.b16 %v923, %v920
    %v1161 = vpack.c.b16 %v927, %v924
    %v1162 = vpack.c.b16 %v928, %v925
    %v1163 = vpack.c.b16 %v929, %v926
    %v1164 = vpack.c.b16 %v933, %v930
    %v1165 = vpack.c.b16 %v934, %v931
    %v1166 = vpack.c.b16 %v935, %v932
    %v1167 = vpack.c.b16 %v939, %v936
    %v1168 = vpack.c.b16 %v940, %v937
    %v1169 = vpack.c.b16 %v941, %v938
    %v1170 = vpack.c.b16 %v945, %v942
    %v1171 = vpack.c.b16 %v946, %v943
    %v1172 = vpack.c.b16 %v947, %v944
    %v1173 = vpack.c.b16 %v951, %v948
    %v1174 = vpack.c.b16 %v952, %v949
    %v1175 = vpack.c.b16 %v953, %v950
    %v1176 = vpack.c.b16 %v957, %v954
    %v1177 = vpack.c.b16 %v958, %v955
    %v1178 = vpack.c.b16 %v959, %v956
    %v1179 = vpack.c.b16 %v963, %v960
    %v1180 = vpack.c.b16 %v964, %v961
    %v1181 = vpack.c.b16 %v965, %v962
    %v1182 = vpack.c.b16 %v969, %v966
    %v1183 = vpack.c.b16 %v970, %v967
    %v1184 = vpack.c.b16 %v971, %v968
    %v1185 = vpack.c.b16 %v975, %v972
    %v1186 = vpack.c.b16 %v976, %v973
    %v1187 = vpack.c.b16 %v977, %v974
    %v1188 = vpack.c.b16 %v981, %v978
    %v1189 = vpack.c.b16 %v982, %v979
    %v1190 = vpack.c.b16 %v983, %v980
    %v1191 = vpack.c.b16 %v987, %v984
    %v1192 = vpack.c.b16 %v988, %v985
    %v1193 = vpack.c.b16 %v989, %v986
    %v1194 = vpack.c.b16 %v993, %v990
    %v1195 = vpack.c.b16 %v994, %v991
    %v1196 = vpack.c.b16 %v995, %v992
    %v1197 = vpack.c.b16 %v999, %v996
    %v1198 = vpack.c.b16 %v1000, %v997
    %v1199 = vpack.c.b16 %v1001, %v998
    %v1200 = vpack.c.b16 %v1005, %v1002
    %v1201 = vpack.c.b16 %v1006, %v1003
    %v1202 = vpack.c.b16 %v1007, %v1004
    %v1203 = vpack.c.b16 %v1011, %v1008
    %v1204 = vpack.c.b16 %v1012, %v1009
    %v1205 = vpack.c.b16 %v1013, %v1010
    %1398 = vmatprep.subr.bf16.mxu0 %v1036
    %1399 = vmatpush1.bf16.msra.mxu0 %v1035
    %1400 = vmatprep.subr.bf16.mxu0 %v1033
    %1401 = vmatpush1.bf16.msra.mxu0 %v1032
    %1402 = vmatprep.subr.bf16.mxu0 %v1030
    %1403 = vmatpush1.bf16.msra.mxu0 %v1029
    %1404 = vmatprep.subr.bf16.mxu0 %v1027
    %1405 = vmatpush1.bf16.msra.mxu0 %v1026
    %1406 = vmatprep.subr.bf16.mxu0 %v1024
    %1407 = vmatpush1.bf16.msra.mxu0 %v1023
    %1408 = vmatprep.subr.bf16.mxu0 %v1021
    %1409 = vmatpush1.bf16.msra.mxu0 %v1020
    %1410 = vmatprep.subr.bf16.mxu0 %v1018
    %1411 = vmatpush1.bf16.msra.mxu0 %v1017
    %1412 = vmatprep.subr.bf16.mxu0 %v1015
    %1413 = vmatpush1.bf16.msra.mxu0 %v1014
    %1414 = vmatprep.subr.bf16.mxu0 %v1060
    %1415 = vmatpush2.bf16.msra.mxu0 %v1059
    %1416 = vmatprep.subr.bf16.mxu0 %v1057
    %1417 = vmatpush2.bf16.msra.mxu0 %v1056
    %1418 = vmatprep.subr.bf16.mxu0 %v1054
    %1419 = vmatpush2.bf16.msra.mxu0 %v1053
    %1420 = vmatprep.subr.bf16.mxu0 %v1051
    %1421 = vmatpush2.bf16.msra.mxu0 %v1050
    %1422 = vmatprep.subr.bf16.mxu0 %v1048
    %1423 = vmatpush2.bf16.msra.mxu0 %v1047
    %1424 = vmatprep.subr.bf16.mxu0 %v1045
    %1425 = vmatpush2.bf16.msra.mxu0 %v1044
    %1426 = vmatprep.subr.bf16.mxu0 %v1042
    %1427 = vmatpush2.bf16.msra.mxu0 %v1041
    %1428 = vmatprep.subr.bf16.mxu0 %v1039
    %1429 = vmatpush2.bf16.msra.mxu0 %v1038
    %1430 = vmatprep.mubr.bf16.mxu0 %v359
    %1431 = vmatmul.mubr.bf16.gmra.mxu0 %v358
    %v1432 = vpop.f32.mrf.mxu0
    %v1433 = vadd.f32 0.0, %v1432
    %v1434 = vpop.f32.mrf.mxu0
    %v1435 = vadd.f32 0.0, %v1434
    %v1436 = vpop.f32.mrf.mxu0
    %v1437 = vpop.f32.mrf.mxu0
    %1438 = vdwg.mxu0
    %1439 = vmatprep.subr.bf16.mxu0 %v1084
    %1440 = vmatpush1.bf16.msra.mxu0 %v1083
    %1441 = vmatprep.subr.bf16.mxu0 %v1081
    %1442 = vmatpush1.bf16.msra.mxu0 %v1080
    %1443 = vmatprep.subr.bf16.mxu0 %v1078
    %1444 = vmatpush1.bf16.msra.mxu0 %v1077
    %1445 = vmatprep.subr.bf16.mxu0 %v1075
    %1446 = vmatpush1.bf16.msra.mxu0 %v1074
    %1447 = vmatprep.subr.bf16.mxu0 %v1072
    %1448 = vmatpush1.bf16.msra.mxu0 %v1071
    %1449 = vmatprep.subr.bf16.mxu0 %v1069
    %1450 = vmatpush1.bf16.msra.mxu0 %v1068
    %1451 = vmatprep.subr.bf16.mxu0 %v1066
    %1452 = vmatpush1.bf16.msra.mxu0 %v1065
    %1453 = vmatprep.subr.bf16.mxu0 %v1063
    %1454 = vmatpush1.bf16.msra.mxu0 %v1062
    %1455 = vmatprep.subr.bf16.mxu0 %v1108
    %1456 = vmatpush2.bf16.msra.mxu0 %v1107
    %1457 = vmatprep.subr.bf16.mxu0 %v1105
    %1458 = vmatpush2.bf16.msra.mxu0 %v1104
    %1459 = vmatprep.subr.bf16.mxu0 %v1102
    %1460 = vmatpush2.bf16.msra.mxu0 %v1101
    %1461 = vmatprep.subr.bf16.mxu0 %v1099
    %1462 = vmatpush2.bf16.msra.mxu0 %v1098
    %1463 = vmatprep.subr.bf16.mxu0 %v1096
    %1464 = vmatpush2.bf16.msra.mxu0 %v1095
    %1465 = vmatprep.subr.bf16.mxu0 %v1093
    %1466 = vmatpush2.bf16.msra.mxu0 %v1092
    %1467 = vmatprep.subr.bf16.mxu0 %v1090
    %1468 = vmatpush2.bf16.msra.mxu0 %v1089
    %1469 = vmatprep.subr.bf16.mxu0 %v1087
    %1470 = vmatpush2.bf16.msra.mxu0 %v1086
    %1471 = vmatprep.mubr.bf16.mxu0 %v361
    %1472 = vmatmul.mubr.bf16.gmra.mxu0 %v360
    %v1473 = vpop.f32.mrf.mxu0
    %v1474 = vadd.f32 %v1433, %v1473
    %v1475 = vpop.f32.mrf.mxu0
    %v1476 = vadd.f32 %v1435, %v1475
    %v1477 = vpop.f32.mrf.mxu0
    %v1478 = vpop.f32.mrf.mxu0
    %1479 = vdwg.mxu0
    %1480 = vmatprep.subr.bf16.mxu0 %v1132
    %1481 = vmatpush1.bf16.msra.mxu0 %v1131
    %1482 = vmatprep.subr.bf16.mxu0 %v1129
    %1483 = vmatpush1.bf16.msra.mxu0 %v1128
    %1484 = vmatprep.subr.bf16.mxu0 %v1126
    %1485 = vmatpush1.bf16.msra.mxu0 %v1125
    %1486 = vmatprep.subr.bf16.mxu0 %v1123
    %1487 = vmatpush1.bf16.msra.mxu0 %v1122
    %1488 = vmatprep.subr.bf16.mxu0 %v1120
    %1489 = vmatpush1.bf16.msra.mxu0 %v1119
    %1490 = vmatprep.subr.bf16.mxu0 %v1117
    %1491 = vmatpush1.bf16.msra.mxu0 %v1116
    %1492 = vmatprep.subr.bf16.mxu0 %v1114
    %1493 = vmatpush1.bf16.msra.mxu0 %v1113
    %1494 = vmatprep.subr.bf16.mxu0 %v1111
    %1495 = vmatpush1.bf16.msra.mxu0 %v1110
    %1496 = vmatprep.subr.bf16.mxu0 %v1156
    %1497 = vmatpush2.bf16.msra.mxu0 %v1155
    %1498 = vmatprep.subr.bf16.mxu0 %v1153
    %1499 = vmatpush2.bf16.msra.mxu0 %v1152
    %1500 = vmatprep.subr.bf16.mxu0 %v1150
    %1501 = vmatpush2.bf16.msra.mxu0 %v1149
    %1502 = vmatprep.subr.bf16.mxu0 %v1147
    %1503 = vmatpush2.bf16.msra.mxu0 %v1146
    %1504 = vmatprep.subr.bf16.mxu0 %v1144
    %1505 = vmatpush2.bf16.msra.mxu0 %v1143
    %1506 = vmatprep.subr.bf16.mxu0 %v1141
    %1507 = vmatpush2.bf16.msra.mxu0 %v1140
    %1508 = vmatprep.subr.bf16.mxu0 %v1138
    %1509 = vmatpush2.bf16.msra.mxu0 %v1137
    %1510 = vmatprep.subr.bf16.mxu0 %v1135
    %1511 = vmatpush2.bf16.msra.mxu0 %v1134
    %1512 = vmatprep.mubr.bf16.mxu0 %v363
    %1513 = vmatmul.mubr.bf16.gmra.mxu0 %v362
    %v1514 = vpop.f32.mrf.mxu0
    %v1515 = vadd.f32 %v1474, %v1514
    %v1516 = vpop.f32.mrf.mxu0
    %v1517 = vadd.f32 %v1476, %v1516
    %v1518 = vpop.f32.mrf.mxu0
    %v1519 = vpop.f32.mrf.mxu0
    %1520 = vdwg.mxu0
    %1521 = vmatprep.subr.bf16.mxu0 %v1180
    %1522 = vmatpush1.bf16.msra.mxu0 %v1179
    %1523 = vmatprep.subr.bf16.mxu0 %v1177
    %1524 = vmatpush1.bf16.msra.mxu0 %v1176
    %1525 = vmatprep.subr.bf16.mxu0 %v1174
    %1526 = vmatpush1.bf16.msra.mxu0 %v1173
    %1527 = vmatprep.subr.bf16.mxu0 %v1171
    %1528 = vmatpush1.bf16.msra.mxu0 %v1170
    %1529 = vmatprep.subr.bf16.mxu0 %v1168
    %1530 = vmatpush1.bf16.msra.mxu0 %v1167
    %1531 = vmatprep.subr.bf16.mxu0 %v1165
    %1532 = vmatpush1.bf16.msra.mxu0 %v1164
    %1533 = vmatprep.subr.bf16.mxu0 %v1162
    %1534 = vmatpush1.bf16.msra.mxu0 %v1161
    %1535 = vmatprep.subr.bf16.mxu0 %v1159
    %1536 = vmatpush1.bf16.msra.mxu0 %v1158
    %1537 = vmatprep.subr.bf16.mxu0 %v1204
    %1538 = vmatpush2.bf16.msra.mxu0 %v1203
    %1539 = vmatprep.subr.bf16.mxu0 %v1201
    %1540 = vmatpush2.bf16.msra.mxu0 %v1200
    %1541 = vmatprep.subr.bf16.mxu0 %v1198
    %1542 = vmatpush2.bf16.msra.mxu0 %v1197
    %1543 = vmatprep.subr.bf16.mxu0 %v1195
    %1544 = vmatpush2.bf16.msra.mxu0 %v1194
    %1545 = vmatprep.subr.bf16.mxu0 %v1192
    %1546 = vmatpush2.bf16.msra.mxu0 %v1191
    %1547 = vmatprep.subr.bf16.mxu0 %v1189
    %1548 = vmatpush2.bf16.msra.mxu0 %v1188
    %1549 = vmatprep.subr.bf16.mxu0 %v1186
    %1550 = vmatpush2.bf16.msra.mxu0 %v1185
    %1551 = vmatprep.subr.bf16.mxu0 %v1183
    %1552 = vmatpush2.bf16.msra.mxu0 %v1182
    %1553 = vmatprep.mubr.bf16.mxu0 %v365
    %1554 = vmatmul.mubr.bf16.gmra.mxu0 %v364
    %v1555 = vpop.f32.mrf.mxu0
    %v1556 = vadd.f32 %v1515, %v1555
    %v1557 = vpop.f32.mrf.mxu0
    %v1558 = vadd.f32 %v1517, %v1557
    %v1559 = vpop.f32.mrf.mxu0
    %v1560 = vpop.f32.mrf.mxu0
    %1561 = vdwg.mxu0
    %1562 = vmatprep.subr.bf16.mxu0 0
    %1563 = vmatpush1.bf16.msra.mxu0 %v1037
    %1564 = vmatprep.subr.bf16.mxu0 0
    %1565 = vmatpush1.bf16.msra.mxu0 %v1034
    %1566 = vmatprep.subr.bf16.mxu0 0
    %1567 = vmatpush1.bf16.msra.mxu0 %v1031
    %1568 = vmatprep.subr.bf16.mxu0 0
    %1569 = vmatpush1.bf16.msra.mxu0 %v1028
    %1570 = vmatprep.subr.bf16.mxu0 0
    %1571 = vmatpush1.bf16.msra.mxu0 %v1025
    %1572 = vmatprep.subr.bf16.mxu0 0
    %1573 = vmatpush1.bf16.msra.mxu0 %v1022
    %1574 = vmatprep.subr.bf16.mxu0 0
    %1575 = vmatpush1.bf16.msra.mxu0 %v1019
    %1576 = vmatprep.subr.bf16.mxu0 0
    %1577 = vmatpush1.bf16.msra.mxu0 %v1016
    %1578 = vmatprep.subr.bf16.mxu0 0
    %1579 = vmatpush2.bf16.msra.mxu0 %v1061
    %1580 = vmatprep.subr.bf16.mxu0 0
    %1581 = vmatpush2.bf16.msra.mxu0 %v1058
    %1582 = vmatprep.subr.bf16.mxu0 0
    %1583 = vmatpush2.bf16.msra.mxu0 %v1055
    %1584 = vmatprep.subr.bf16.mxu0 0
    %1585 = vmatpush2.bf16.msra.mxu0 %v1052
    %1586 = vmatprep.subr.bf16.mxu0 0
    %1587 = vmatpush2.bf16.msra.mxu0 %v1049
    %1588 = vmatprep.subr.bf16.mxu0 0
    %1589 = vmatpush2.bf16.msra.mxu0 %v1046
    %1590 = vmatprep.subr.bf16.mxu0 0
    %1591 = vmatpush2.bf16.msra.mxu0 %v1043
    %1592 = vmatprep.subr.bf16.mxu0 0
    %1593 = vmatpush2.bf16.msra.mxu0 %v1040
    %1594 = vmatprep.mubr.bf16.mxu0 %v359
    %1595 = vmatmul.mubr.bf16.gmra.mxu0 %v358
    %v1596 = vpop.f32.mrf.mxu0
    %v1597 = vadd.f32 0.0, %v1596
    %v1598 = vpop.f32.mrf.mxu0
    %v1599 = vpop.f32.mrf.mxu0
    %v1600 = vpop.f32.mrf.mxu0
    %1601 = vdwg.mxu0
    %1602 = vmatprep.subr.bf16.mxu0 0
    %1603 = vmatpush1.bf16.msra.mxu0 %v1085
    %1604 = vmatprep.subr.bf16.mxu0 0
    %1605 = vmatpush1.bf16.msra.mxu0 %v1082
    %1606 = vmatprep.subr.bf16.mxu0 0
    %1607 = vmatpush1.bf16.msra.mxu0 %v1079
    %1608 = vmatprep.subr.bf16.mxu0 0
    %1609 = vmatpush1.bf16.msra.mxu0 %v1076
    %1610 = vmatprep.subr.bf16.mxu0 0
    %1611 = vmatpush1.bf16.msra.mxu0 %v1073
    %1612 = vmatprep.subr.bf16.mxu0 0
    %1613 = vmatpush1.bf16.msra.mxu0 %v1070
    %1614 = vmatprep.subr.bf16.mxu0 0
    %1615 = vmatpush1.bf16.msra.mxu0 %v1067
    %1616 = vmatprep.subr.bf16.mxu0 0
    %1617 = vmatpush1.bf16.msra.mxu0 %v1064
    %1618 = vmatprep.subr.bf16.mxu0 0
    %1619 = vmatpush2.bf16.msra.mxu0 %v1109
    %1620 = vmatprep.subr.bf16.mxu0 0
    %1621 = vmatpush2.bf16.msra.mxu0 %v1106
    %1622 = vmatprep.subr.bf16.mxu0 0
    %1623 = vmatpush2.bf16.msra.mxu0 %v1103
    %1624 = vmatprep.subr.bf16.mxu0 0
    %1625 = vmatpush2.bf16.msra.mxu0 %v1100
    %1626 = vmatprep.subr.bf16.mxu0 0
    %1627 = vmatpush2.bf16.msra.mxu0 %v1097
    %1628 = vmatprep.subr.bf16.mxu0 0
    %1629 = vmatpush2.bf16.msra.mxu0 %v1094
    %1630 = vmatprep.subr.bf16.mxu0 0
    %1631 = vmatpush2.bf16.msra.mxu0 %v1091
    %1632 = vmatprep.subr.bf16.mxu0 0
    %1633 = vmatpush2.bf16.msra.mxu0 %v1088
    %1634 = vmatprep.mubr.bf16.mxu0 %v361
    %1635 = vmatmul.mubr.bf16.gmra.mxu0 %v360
    %v1636 = vpop.f32.mrf.mxu0
    %v1637 = vadd.f32 %v1597, %v1636
    %v1638 = vpop.f32.mrf.mxu0
    %v1639 = vpop.f32.mrf.mxu0
    %v1640 = vpop.f32.mrf.mxu0
    %1641 = vdwg.mxu0
    %1642 = vmatprep.subr.bf16.mxu0 0
    %1643 = vmatpush1.bf16.msra.mxu0 %v1133
    %1644 = vmatprep.subr.bf16.mxu0 0
    %1645 = vmatpush1.bf16.msra.mxu0 %v1130
    %1646 = vmatprep.subr.bf16.mxu0 0
    %1647 = vmatpush1.bf16.msra.mxu0 %v1127
    %1648 = vmatprep.subr.bf16.mxu0 0
    %1649 = vmatpush1.bf16.msra.mxu0 %v1124
    %1650 = vmatprep.subr.bf16.mxu0 0
    %1651 = vmatpush1.bf16.msra.mxu0 %v1121
    %1652 = vmatprep.subr.bf16.mxu0 0
    %1653 = vmatpush1.bf16.msra.mxu0 %v1118
    %1654 = vmatprep.subr.bf16.mxu0 0
    %1655 = vmatpush1.bf16.msra.mxu0 %v1115
    %1656 = vmatprep.subr.bf16.mxu0 0
    %1657 = vmatpush1.bf16.msra.mxu0 %v1112
    %1658 = vmatprep.subr.bf16.mxu0 0
    %1659 = vmatpush2.bf16.msra.mxu0 %v1157
    %1660 = vmatprep.subr.bf16.mxu0 0
    %1661 = vmatpush2.bf16.msra.mxu0 %v1154
    %1662 = vmatprep.subr.bf16.mxu0 0
    %1663 = vmatpush2.bf16.msra.mxu0 %v1151
    %1664 = vmatprep.subr.bf16.mxu0 0
    %1665 = vmatpush2.bf16.msra.mxu0 %v1148
    %1666 = vmatprep.subr.bf16.mxu0 0
    %1667 = vmatpush2.bf16.msra.mxu0 %v1145
    %1668 = vmatprep.subr.bf16.mxu0 0
    %1669 = vmatpush2.bf16.msra.mxu0 %v1142
    %1670 = vmatprep.subr.bf16.mxu0 0
    %1671 = vmatpush2.bf16.msra.mxu0 %v1139
    %1672 = vmatprep.subr.bf16.mxu0 0
    %1673 = vmatpush2.bf16.msra.mxu0 %v1136
    %1674 = vmatprep.mubr.bf16.mxu0 %v363
    %1675 = vmatmul.mubr.bf16.gmra.mxu0 %v362
    %v1676 = vpop.f32.mrf.mxu0
    %v1677 = vadd.f32 %v1637, %v1676
    %v1678 = vpop.f32.mrf.mxu0
    %v1679 = vpop.f32.mrf.mxu0
    %v1680 = vpop.f32.mrf.mxu0
    %1681 = vdwg.mxu0
    %1682 = vmatprep.subr.bf16.mxu0 0
    %1683 = vmatpush1.bf16.msra.mxu0 %v1181
    %1684 = vmatprep.subr.bf16.mxu0 0
    %1685 = vmatpush1.bf16.msra.mxu0 %v1178
    %1686 = vmatprep.subr.bf16.mxu0 0
    %1687 = vmatpush1.bf16.msra.mxu0 %v1175
    %1688 = vmatprep.subr.bf16.mxu0 0
    %1689 = vmatpush1.bf16.msra.mxu0 %v1172
    %1690 = vmatprep.subr.bf16.mxu0 0
    %1691 = vmatpush1.bf16.msra.mxu0 %v1169
    %1692 = vmatprep.subr.bf16.mxu0 0
    %1693 = vmatpush1.bf16.msra.mxu0 %v1166
    %1694 = vmatprep.subr.bf16.mxu0 0
    %1695 = vmatpush1.bf16.msra.mxu0 %v1163
    %1696 = vmatprep.subr.bf16.mxu0 0
    %1697 = vmatpush1.bf16.msra.mxu0 %v1160
    %1698 = vmatprep.subr.bf16.mxu0 0
    %1699 = vmatpush2.bf16.msra.mxu0 %v1205
    %1700 = vmatprep.subr.bf16.mxu0 0
    %1701 = vmatpush2.bf16.msra.mxu0 %v1202
    %1702 = vmatprep.subr.bf16.mxu0 0
    %1703 = vmatpush2.bf16.msra.mxu0 %v1199
    %1704 = vmatprep.subr.bf16.mxu0 0
    %1705 = vmatpush2.bf16.msra.mxu0 %v1196
    %1706 = vmatprep.subr.bf16.mxu0 0
    %1707 = vmatpush2.bf16.msra.mxu0 %v1193
    %1708 = vmatprep.subr.bf16.mxu0 0
    %1709 = vmatpush2.bf16.msra.mxu0 %v1190
    %1710 = vmatprep.subr.bf16.mxu0 0
    %1711 = vmatpush2.bf16.msra.mxu0 %v1187
    %1712 = vmatprep.subr.bf16.mxu0 0
    %1713 = vmatpush2.bf16.msra.mxu0 %v1184
    %1714 = vmatprep.mubr.bf16.mxu0 %v365
    %1715 = vmatmul.mubr.bf16.gmra.mxu0 %v364
    %v1716 = vpop.f32.mrf.mxu0
    %v1717 = vadd.f32 %v1677, %v1716
    %v1718 = vpop.f32.mrf.mxu0
    %v1719 = vpop.f32.mrf.mxu0
    %v1720 = vpop.f32.mrf.mxu0
    %1721 = vdwg.mxu0
    %v1722 = vadd.f32 %v83, %v1556
    %v1723 = vadd.f32 %v84, %v1558
    %v1724 = vadd.f32 %v85, %v1717
    %1725 = vst [vmem:[#allocation2] sm:$0xff] %v1722
    %1726 = vst [vmem:[#allocation2 + $0x8] sm:$0xff] %v1723
    %1727 = vst [vmem:[#allocation2 + $0x10] sm:$0xff] %v1724
    // Predicated region
    $region38: #{tpu_custom_call.1} parent=1 // pred_check
      %p1728 = pneg %p59
    $region39: #{tpu_custom_call.1} parent=1 // pred_check_branch
      %1730 = sbr.rel (%p1728) target = $region41
    $region40: #{tpu_custom_call.1} parent=1 // pred_region
      %v1731 = vld [vmem:[#allocation2] sm:$0xff]
      %v1732 = vld [vmem:[#allocation2 + $0x8] sm:$0xff]
      %v1733 = vld [vmem:[#allocation2 + $0x10] sm:$0xff]
      %v1734 = vrot.slane %v1731, 4
      %v1735 = vadd.f32 %v1731, %v1734
      %v1736 = vrot.slane %v1735, 2
      %v1737 = vadd.f32 %v1735, %v1736
      %v1738 = vrot.slane %v1737, 1
      %v1739 = vadd.f32 %v1737, %v1738
      %v1740 = vrot.slane %v1732, 4
      %v1741 = vadd.f32 %v1732, %v1740
      %v1742 = vrot.slane %v1741, 2
      %v1743 = vadd.f32 %v1741, %v1742
      %v1744 = vrot.slane %v1743, 1
      %v1745 = vadd.f32 %v1743, %v1744
      %v1746 = vrot.slane %v1733, 4
      %v1747 = vadd.f32 %v1733, %v1746
      %v1748 = vrot.slane %v1747, 2
      %v1749 = vadd.f32 %v1747, %v1748
      %v1750 = vrot.slane %v1749, 1
      %v1751 = vadd.f32 %v1749, %v1750
      %v1752 = vrcp.pop 8.0
      %v1753 = vmul.f32 %v1739, %v1752
      %v1754 = vmul.f32 %v1745, %v1752
      %v1755 = vmul.f32 %v1751, %v1752
      %v1756 = vsub.f32 %v1731, %v1753
      %v1757 = vsub.f32 %v1732, %v1754
      %v1758 = vsub.f32 %v1733, %v1755
      %v1759 = vmul.f32 %v1756, %v1756
      %v1760 = vmul.f32 %v1757, %v1757
      %v1761 = vmul.f32 %v1758, %v1758
      %v1762 = vrot.slane %v1759, 4
      %v1763 = vadd.f32 %v1759, %v1762
      %v1764 = vrot.slane %v1763, 2
      %v1765 = vadd.f32 %v1763, %v1764
      %v1766 = vrot.slane %v1765, 1
      %v1767 = vadd.f32 %v1765, %v1766
      %v1768 = vrot.slane %v1760, 4
      %v1769 = vadd.f32 %v1760, %v1768
      %v1770 = vrot.slane %v1769, 2
      %v1771 = vadd.f32 %v1769, %v1770
      %v1772 = vrot.slane %v1771, 1
      %v1773 = vadd.f32 %v1771, %v1772
      %v1774 = vrot.slane %v1761, 4
      %v1775 = vadd.f32 %v1761, %v1774
      %v1776 = vrot.slane %v1775, 2
      %v1777 = vadd.f32 %v1775, %v1776
      %v1778 = vrot.slane %v1777, 1
      %v1779 = vadd.f32 %v1777, %v1778
      %v1780 = vmul.f32 %v1767, %v1752
      %v1781 = vmul.f32 %v1773, %v1752
      %v1782 = vmul.f32 %v1779, %v1752
      %v1783 = vadd.f32 %v1780, 1e-05
      %v1784 = vadd.f32 %v1781, 1e-05
      %v1785 = vadd.f32 %v1782, 1e-05
      %v1786 = vrsqrt.pop %v1783
      %v1787 = vrsqrt.pop %v1784
      %v1788 = vrsqrt.pop %v1785
      %v1789 = vmul.f32 %v1756, %v1786
      %v1790 = vmul.f32 %v1757, %v1787
      %v1791 = vmul.f32 %v1758, %v1788
      %s1792 = scalar_lea.vmem [#allocation8], 1
      %v1793 = vld [vmem:[%s1792] ss:$4 sm:$0x7]
      %v1795 = vlaneseq
      %v1796 = vshrl.u32 %v1795, 7
      %v1797 = vsub.s32 0, %v1796
      %v1798 = vrot.slane %v1793, %v1797
      %v1799 = vlaneseq
      %v1800 = vshrl.u32 %v1799, 7
      %v1801 = vsub.s32 1, %v1800
      %v1802 = vrot.slane %v1793, %v1801
      %v1803 = vlaneseq
      %v1804 = vshrl.u32 %v1803, 7
      %v1805 = vsub.s32 2, %v1804
      %v1806 = vrot.slane %v1793, %v1805
      %v1810 = vmul.f32 %v1798, %v1789
      %v1811 = vmul.f32 %v1802, %v1790
      %v1812 = vmul.f32 %v1806, %v1791
      %s1813 = scalar_lea.vmem [#allocation8], 2
      %v1814 = vld [vmem:[%s1813] ss:$4 sm:$0x7]
      %v1816 = vlaneseq
      %v1817 = vshrl.u32 %v1816, 7
      %v1818 = vsub.s32 0, %v1817
      %v1819 = vrot.slane %v1814, %v1818
      %v1820 = vlaneseq
      %v1821 = vshrl.u32 %v1820, 7
      %v1822 = vsub.s32 1, %v1821
      %v1823 = vrot.slane %v1814, %v1822
      %v1824 = vlaneseq
      %v1825 = vshrl.u32 %v1824, 7
      %v1826 = vsub.s32 2, %v1825
      %v1827 = vrot.slane %v1814, %v1826
      %v1831 = vadd.f32 %v1810, %v1819
      %v1832 = vadd.f32 %v1811, %v1823
      %v1833 = vadd.f32 %v1812, %v1827
      %v1834 = vmax.f32 %v1831, 0.0
      %v1835 = vmax.f32 %v1832, 0.0
      %v1836 = vmax.f32 %v1833, 0.0
      %v1837 = vld [vmem:[%s3] sm:$0x7]
      %v1839 = vlaneseq
      %v1840 = vshrl.u32 %v1839, 7
      %v1841 = vsub.s32 0, %v1840
      %v1842 = vrot.slane %v1837, %v1841
      %v1843 = vlaneseq
      %v1844 = vshrl.u32 %v1843, 7
      %v1845 = vsub.s32 1, %v1844
      %v1846 = vrot.slane %v1837, %v1845
      %v1847 = vlaneseq
      %v1848 = vshrl.u32 %v1847, 7
      %v1849 = vsub.s32 2, %v1848
      %v1850 = vrot.slane %v1837, %v1849
      %v1854 = vmul.f32 %v1834, %v1842
      %v1855 = vmul.f32 %v1835, %v1846
      %v1856 = vmul.f32 %v1836, %v1850
      %v1857 = vadd.f32 %v1854, %v1855
      %v1858 = vadd.f32 %v1857, %v1856
      %1859 = vadd.xlane.f32.xlu0 %v1858
      %v1860 = vpop.xlane.xlu0 %1859
      %s1861 = sld [smem:[#allocation3]]
      %v1862 = vstv %s1861
      %v1863 = vadd.f32 %v1860, %v1862
      %v1864 = vmax.f32 %v1863, 0.0
      %vm1865 = vcmask 7168
      %1866 = vst.msk [vmem:[%s5] sm:$0xff] %vm1865, %v1864
    $region41: #{tpu_custom_call.1} parent=1 // pred_fallthru
      _
    // Predicated region
    $region42: #{tpu_custom_call.1} parent=1 // pred_check
      _
    $region43: #{tpu_custom_call.1} parent=1 // pred_check_branch
      %1868 = sbr.rel (0) target = $region45
    $region44: #{tpu_custom_call.1} parent=1 // pred_region
      _
    $region45: #{tpu_custom_call.1} parent=1 // pred_fallthru
      _
    // Predicated region
    $region46: #{tpu_custom_call.1} parent=1 // pred_check
      _
    $region47: #{tpu_custom_call.1} parent=1 // pred_check_branch
      %1870 = sbr.rel (0) target = $region49
    $region48: #{tpu_custom_call.1} parent=1 // pred_region
      _
    $region49: #{tpu_custom_call.1} parent=1 // pred_fallthru
      _
    %1871 = vsyncpa [#allocation5], 1
    %1872 = vsyncpa [#allocation7], 1

</llo_original>
